<compile_context>
chip_gen: v7x
topology: tpu7x:2x2x1
jax: 0.10.0
libtpu: 0.0.40
codegen_flags: <defaults>
</compile_context>

<pallas_src>
import functools

import jax
import jax.numpy as jnp
from jax import lax
from jax.experimental import pallas as pl
from jax.experimental.pallas import tpu as pltpu

_EPS = 1e-5

# None = auto (bf16 operands once K/N are production-sized); True/False forces.
MATMUL_BF16 = None


def _round_up(x, m):
    return ((x + m - 1) // m) * m


@functools.lru_cache(maxsize=None)
def _vmem_limit_bytes():
    # ~75% of physical VMEM: ~96 MiB on v5e/v6e (128 MiB), ~48 MiB on v7x (64 MiB/TC)
    cap = 128 * 1024 * 1024
    try:
        info = pltpu.get_tpu_info()
        cap = int(getattr(info, "vmem_capacity_bytes", cap) or cap)
    except Exception:
        pass
    return min((cap * 3) // 4, 96 * 1024 * 1024)


def _compiler_params(dims):
    return pltpu.CompilerParams(
        dimension_semantics=dims,
        vmem_limit_bytes=_vmem_limit_bytes(),
    )


def _matmul_dtype(K, Np):
    # bf16 operands run the MXU at native rate on v5e/v6e/v7x and halve A/B HBM
    # traffic.  At toy channel counts keep f32 so results match the f32
    # reference bit-tightly; stats are always derived from the f32 accumulator.
    if MATMUL_BF16 is not None:
        return jnp.bfloat16 if MATMUL_BF16 else jnp.float32
    return jnp.bfloat16 if (K >= 256 and Np >= 128) else jnp.float32


# ----------------------- conv matmul + fused BN stats -----------------------

def _acc_stats(a, b_ref, o_ref, s_ref, q_ref):
    k = pl.program_id(2)

    @pl.when(k == 0)
    def _():
        o_ref[...] = jnp.zeros_like(o_ref)

    # accumulate directly into the f32 output block (resident across k)
    o_ref[...] += jnp.dot(a, b_ref[...], preferred_element_type=jnp.float32)

    @pl.when(k == pl.num_programs(2) - 1)
    def _():
        res = o_ref[...]
        # per-channel stats ride the XLU slot while the MXU is busy
        s_ref[...] = jnp.sum(res, axis=0, keepdims=True)[None]
        q_ref[...] = jnp.sum(res * res, axis=0, keepdims=True)[None]


def _conv_stats_kernel(a_ref, b_ref, o_ref, s_ref, q_ref):
    _acc_stats(a_ref[...], b_ref, o_ref, s_ref, q_ref)


def _conv_affine_stats_kernel(a_ref, b_ref, sA_ref, bA_ref, o_ref, s_ref, q_ref):
    # BN1 + ReLU folded onto the A operand (VPU work, hidden under the MXU dot)
    a = jnp.maximum(a_ref[...].astype(jnp.float32) * sA_ref[...] + bA_ref[...], 0.0)
    _acc_stats(a.astype(b_ref.dtype), b_ref, o_ref, s_ref, q_ref)


def _pick_tk(K):
    # largest multiple-of-128 divisor of K that is <= 512; else full K.
    for cand in (512, 384, 256, 128):
        if K >= cand and K % cand == 0:
            return cand
    return K


def _pick_tn(Np):
    if Np >= 256 and Np % 256 == 0:
        return 256            # fill v6e/v7x 256x256 MXU
    if Np % 128 == 0:
        return 128
    return Np                 # small true-channel width (single tile)


def conv_matmul_stats(a, b, *, a_affine=None, tm_cap=512):
    """(M, K) @ (K, Np) -> f32 conv output (M, Np) + per-column sum / sum-sq.

    If a_affine=(scale, bias) [(1, K) each], relu(a*scale+bias) is applied to
    the A tile inside the kernel before the dot (BN+ReLU fused into the matmul).
    """
    M, K = a.shape
    Kb, Np = b.shape
    assert K == Kb
    tm = min(tm_cap, _round_up(M, 8))
    Mp = _round_up(M, tm)
    if Mp != M:
        if a_affine is None:
            a = jnp.pad(a, ((0, Mp - M), (0, 0)))        # zero rows -> 0 contribution
        else:
            sA, bA = a_affine
            rp = jnp.where(sA != 0.0, -bA / sA, 0.0)     # relu(rp*s+b) == 0 exactly
            a = jnp.concatenate([a, jnp.broadcast_to(rp, (Mp - M, K))], axis=0)

    tk = _pick_tk(K)
    tn = _pick_tn(Np)
    cdt = _matmul_dtype(K, Np)
    a = a.astype(cdt)
    b = b.astype(cdt)

    gi = Mp // tm
    grid = (Np // tn, gi, K // tk)                        # reduction (k) innermost

    a_spec = pl.BlockSpec((tm, tk), lambda j, i, k: (i, k))
    b_spec = pl.BlockSpec((tk, tn), lambda j, i, k: (k, j))
    o_spec = pl.BlockSpec((tm, tn), lambda j, i, k: (i, j))
    v_spec = pl.BlockSpec((1, 1, tn), lambda j, i, k: (i, 0, j))   # per-i partial stats

    if a_affine is None:
        kern = _conv_stats_kernel
        in_specs = [a_spec, b_spec]
        args = (a, b)
    else:
        kern = _conv_affine_stats_kernel
        aff_spec = pl.BlockSpec((1, tk), lambda j, i, k: (0, k))
        in_specs = [a_spec, b_spec, aff_spec, aff_spec]
        args = (a, b, a_affine[0], a_affine[1])

    out, s_part, q_part = pl.pallas_call(
        kern,
        out_shape=(jax.ShapeDtypeStruct((Mp, Np), jnp.float32),
                   jax.ShapeDtypeStruct((gi, 1, Np), jnp.float32),
                   jax.ShapeDtypeStruct((gi, 1, Np), jnp.float32)),
        grid=grid,
        in_specs=in_specs,
        out_specs=(o_spec, v_spec, v_spec),
        compiler_params=_compiler_params(("parallel", "parallel", "arbitrary")),
    )(*args)
    # tiny reduction over the per-M-tile partials
    return out[:M], s_part.sum(axis=0), q_part.sum(axis=0)


# ----------------------- fused BN finalize + elementwise ---------------------

def _bn_scale_bias(s, q, g, b, inv_m, eps):
    mean = s * inv_m
    var = jnp.maximum(q * inv_m - mean * mean, 0.0)   # guard cancellation
    scale = g * lax.rsqrt(var + eps)
    bias = b - mean * scale
    return scale, bias


def _bn2_skipconv_add_relu_kernel(c_ref, x_ref, w_ref, s2_ref, q2_ref, g2_ref,
                                  b2_ref, ss_ref, qs_ref, gs_ref, bs_ref,
                                  o_ref, *, inv_m, eps):
    sc2, bi2 = _bn_scale_bias(s2_ref[...], q2_ref[...], g2_ref[...], b2_ref[...],
                              inv_m, eps)
    scs, bis = _bn_scale_bias(ss_ref[...], qs_ref[...], gs_ref[...], bs_ref[...],
                              inv_m, eps)
    skip = jnp.dot(x_ref[...], w_ref[...], preferred_element_type=jnp.float32)
    o_ref[...] = jnp.maximum(c_ref[...] * sc2 + skip * scs + (bi2 + bis), 0.0)


def _bn2_id_add_relu_kernel(c_ref, x_ref, s2_ref, q2_ref, g2_ref, b2_ref,
                            o_ref, *, inv_m, eps):
    sc2, bi2 = _bn_scale_bias(s2_ref[...], q2_ref[...], g2_ref[...], b2_ref[...],
                              inv_m, eps)
    o_ref[...] = jnp.maximum(c_ref[...] * sc2 + bi2 + x_ref[...], 0.0)


def _row_tiles(M, target=2048):
    tm = min(target, _round_up(M, 8))
    return tm, _round_up(M, tm)


def bn_add_relu_skipconv(conv2, x_s, w_s, s2, q2, g2, b2, ss, qs, gs, bs, count):
    M, C = conv2.shape
    Cin = x_s.shape[1]
    tm, Mp = _row_tiles(M)
    if Mp != M:
        conv2 = jnp.pad(conv2, ((0, Mp - M), (0, 0)))
        x_s = jnp.pad(x_s, ((0, Mp - M), (0, 0)))
    big_c = pl.BlockSpec((tm, C), lambda i: (i, 0))
    big_x = pl.BlockSpec((tm, Cin), lambda i: (i, 0))
    w_spec = pl.BlockSpec((Cin, C), lambda i: (0, 0))
    vec = pl.BlockSpec((1, C), lambda i: (0, 0))
    kern = functools.partial(_bn2_skipconv_add_relu_kernel,
                             inv_m=1.0 / count, eps=_EPS)
    out = pl.pallas_call(
        kern,
        out_shape=jax.ShapeDtypeStruct((Mp, C), jnp.float32),
        grid=(Mp // tm,),
        in_specs=[big_c, big_x, w_spec] + [vec] * 8,
        out_specs=big_c,
        compiler_params=_compiler_params(("parallel",)),
    )(conv2, x_s, w_s, s2, q2, g2, b2, ss, qs, gs, bs)
    return out[:M]


def bn_add_relu_identity(conv2, x_flat, s2, q2, g2, b2, count):
    M, C = conv2.shape
    tm, Mp = _row_tiles(M)
    if Mp != M:
        conv2 = jnp.pad(conv2, ((0, Mp - M), (0, 0)))
        x_flat = jnp.pad(x_flat, ((0, Mp - M), (0, 0)))
    big = pl.BlockSpec((tm, C), lambda i: (i, 0))
    vec = pl.BlockSpec((1, C), lambda i: (0, 0))
    kern = functools.partial(_bn2_id_add_relu_kernel, inv_m=1.0 / count, eps=_EPS)
    out = pl.pallas_call(
        kern,
        out_shape=jax.ShapeDtypeStruct((Mp, C), jnp.float32),
        grid=(Mp // tm,),
        in_specs=[big, big, vec, vec, vec, vec],
        out_specs=big,
        compiler_params=_compiler_params(("parallel",)),
    )(conv2, x_flat, s2, q2, g2, b2)
    return out[:M]


# ------------------------------ glue (JAX) ---------------------------------

def im2col(x_nhwc, kh, kw, stride, pad):
    # TODO(synk): replace with in-kernel shifted-tap accumulation to avoid
    # materializing ~kh*kw x the activation volume in HBM.
    N, H, W, C = x_nhwc.shape
    xp = jnp.pad(x_nhwc, ((0, 0), (pad, pad), (pad, pad), (0, 0))) if pad else x_nhwc
    Ho = (H + 2 * pad - kh) // stride + 1
    Wo = (W + 2 * pad - kw) // stride + 1
    taps = []
    for i in range(kh):
        for j in range(kw):
            taps.append(xp[:, i:i + stride * Ho:stride,
                           j:j + stride * Wo:stride, :])
    patches = jnp.stack(taps, axis=3)                  # (N, Ho, Wo, kh*kw, C)
    return patches.reshape(N * Ho * Wo, kh * kw * C), Ho, Wo


def _weight_to_col(w, cin_pad=None, cout_pad=None):
    # (Cout, Cin, kh, kw) -> (kh*kw*cin_pad, cout_pad), matching im2col columns.
    Cout, Cin, kh, kw = w.shape
    cin_pad = Cin if cin_pad is None else cin_pad
    cout_pad = Cout if cout_pad is None else cout_pad
    wp = jnp.pad(w, ((0, cout_pad - Cout), (0, cin_pad - Cin), (0, 0), (0, 0)))
    return jnp.transpose(wp, (2, 3, 1, 0)).reshape(kh * kw * cin_pad, cout_pad)


def _pad_vec(v, n):
    return jnp.pad(v, (0, n - v.shape[0])).reshape(1, n)


def _channel_pad(c):
    # lane-dense (multiple of 128) only when it does not inflate HBM traffic;
    # at small channel counts keep the true width (blocks use the full dim).
    return _round_up(c, 128) if c >= 128 else c


def residual_forward_pallas(x_nchw, params, stride):
    x = jnp.transpose(x_nchw, (0, 2, 3, 1)).astype(jnp.float32)    # NHWC
    N, H, W, Cin = x.shape
    Cout = params['w1'].shape[0]
    Cp = _channel_pad(Cout)

    # conv1 (3x3, stride, zero pad 1) with fused per-channel stats
    a1, Ho, Wo = im2col(x, 3, 3, stride, 1)
    M1 = a1.shape[0]
    conv1, s1, q1 = conv_matmul_stats(a1, _weight_to_col(params['w1'],
                                                         cout_pad=Cp))

    # BN1 finalize (tiny (1,Cp) vectors); BN1+ReLU itself is folded into conv2
    g1p, b1p = _pad_vec(params['g1'], Cp), _pad_vec(params['b1'], Cp)
    scale1, bias1 = _bn_scale_bias(s1, q1, g1p, b1p, 1.0 / M1, _EPS)
    # per-channel value that BN1+ReLU maps exactly to 0 -> stands in for the
    # zero spatial padding of relu1 (exact whenever gamma1 != 0)
    pad1 = jnp.where(scale1 != 0.0, -bias1 / scale1, 0.0)           # (1, Cp)

    conv1_sp = conv1.reshape(N, Ho, Wo, Cp)
    yp = jnp.broadcast_to(pad1.reshape(1, 1, 1, Cp), (N, Ho + 2, Wo + 2, Cp))
    yp = yp.at[:, 1:-1, 1:-1, :].set(conv1_sp)

    # conv2 (3x3, stride 1) with BN1+ReLU fused onto its A operand
    a2, Ho2, Wo2 = im2col(yp, 3, 3, 1, 0)
    M2 = a2.shape[0]
    scaleA = jnp.tile(scale1, (1, 9))                               # tap-major columns
    biasA = jnp.tile(bias1, (1, 9))
    conv2, s2, q2 = conv_matmul_stats(
        a2, _weight_to_col(params['w2'], cin_pad=Cp, cout_pad=Cp),
        a_affine=(scaleA, biasA))

    g2p, b2p = _pad_vec(params['g2'], Cp), _pad_vec(params['b2'], Cp)

    has_skip = (stride != 1) or (Cin != Cout)
    if has_skip:
        # 1x1 skip conv + its BN are folded into the final kernel; its BN stats
        # come analytically from one pass over the strided input:
        #   s = (sum_m x) @ Ws,   q_c = ws_c^T (x^T x) ws_c
        x_s = x[:, ::stride, ::stride, :].reshape(-1, Cin)          # (M2, Cin)
        w_s = jnp.pad(params['ws'][:, :, 0, 0],
                      ((0, Cp - Cout), (0, 0))).T                   # (Cin, Cp)
        sum_x = jnp.sum(x_s, axis=0)                                # (Cin,)
        gram = x_s.T @ x_s                                          # (Cin, Cin)
        ss = (sum_x @ w_s).reshape(1, Cp)
        qs = jnp.einsum('ic,ij,jc->c', w_s, gram, w_s).reshape(1, Cp)
        out = bn_add_relu_skipconv(conv2, x_s, w_s, s2, q2, g2p, b2p,
                                   ss, qs, _pad_vec(params['gs'], Cp),
                                   _pad_vec(params['bs'], Cp), M2)
    else:
        x_flat = x.reshape(N * H * W, Cin)
        if Cp != Cin:
            x_flat = jnp.pad(x_flat, ((0, 0), (0, Cp - Cin)))
        out = bn_add_relu_identity(conv2, x_flat, s2, q2, g2p, b2p, M2)

    out = out[:, :Cout].reshape(N, Ho2, Wo2, Cout)
    return jnp.transpose(out, (0, 3, 1, 2))                         # NCHW


residual_forward = jax.jit(residual_forward_pallas, static_argnums=(2,))


# ---------------------------- pure-JAX reference ----------------------------

def _bn_train_ref(x, gamma, beta, eps=_EPS):
    mean = jnp.mean(x, axis=(0, 2, 3), keepdims=True)
    var = jnp.mean((x - mean) ** 2, axis=(0, 2, 3), keepdims=True)
    return ((x - mean) / jnp.sqrt(var + eps)
            * gamma[None, :, None, None] + beta[None, :, None, None])


def residual_forward_ref(x, params, stride):
    dn = ('NCHW', 'OIHW', 'NCHW')
    conv1 = lax.conv_general_dilated(x, params['w1'], (stride, stride),
                                     ((1, 1), (1, 1)), dimension_numbers=dn)
    r1 = jnp.maximum(_bn_train_ref(conv1, params['g1'], params['b1']), 0.0)
    conv2 = lax.conv_general_dilated(r1, params['w2'], (1, 1),
                                     ((1, 1), (1, 1)), dimension_numbers=dn)
    bn2 = _bn_train_ref(conv2, params['g2'], params['b2'])
    Cin, Cout = x.shape[1], params['w1'].shape[0]
    if stride != 1 or Cin != Cout:
        sk = lax.conv_general_dilated(x, params['ws'], (stride, stride),
                                      ((0, 0), (0, 0)), dimension_numbers=dn)
        sk = _bn_train_ref(sk, params['gs'], params['bs'])
    else:
        sk = x
    return jnp.maximum(bn2 + sk, 0.0)


# ------------------------------- params init --------------------------------

def make_params(key, inp_dim, out_dim, has_skip):
    k0, k1, k2 = jax.random.split(key, 3)
    p = {
        'w1': 0.1 * jax.random.normal(k0, (out_dim, inp_dim, 3, 3), jnp.float32),
        'g1': jnp.linspace(0.8, 1.2, out_dim, dtype=jnp.float32),
        'b1': jnp.linspace(-0.1, 0.1, out_dim, dtype=jnp.float32),
        'w2': 0.1 * jax.random.normal(k1, (out_dim, out_dim, 3, 3), jnp.float32),
        'g2': jnp.linspace(1.1, 0.9, out_dim, dtype=jnp.float32),
        'b2': jnp.linspace(0.05, -0.05, out_dim, dtype=jnp.float32),
    }
    if has_skip:
        p['ws'] = 0.1 * jax.random.normal(k2, (out_dim, inp_dim, 1, 1), jnp.float32)
        p['gs'] = jnp.linspace(0.9, 1.1, out_dim, dtype=jnp.float32)
        p['bs'] = jnp.linspace(-0.05, 0.05, out_dim, dtype=jnp.float32)
    return p


# ---------------------------------- main ------------------------------------

if __name__ == "__main__":
    key = jax.random.PRNGKey(0)
    kx, kp1, kp2 = jax.random.split(key, 3)

    # Case 1: downsampling residual (stride=2, inp_dim != out_dim) -> conv skip
    x1 = jax.random.normal(kx, (2, 4, 16, 16), jnp.float32)
    params1 = make_params(kp1, inp_dim=4, out_dim=8, has_skip=True)
    out1 = residual_forward(x1, params1, 2)
    ref1 = residual_forward_ref(x1, params1, 2)
    jax.block_until_ready(out1)
    assert out1.shape == (2, 8, 8, 8)
    assert jnp.allclose(out1, ref1, atol=5e-4, rtol=5e-4), "mismatch (conv skip)"

    # Case 2: identity skip (stride=1, inp_dim == out_dim)
    x2 = jax.random.normal(kx, (2, 8, 16, 16), jnp.float32)
    params2 = make_params(kp2, inp_dim=8, out_dim=8, has_skip=False)
    out2 = residual_forward(x2, params2, 1)
    ref2 = residual_forward_ref(x2, params2, 1)
    jax.block_until_ready(out2)
    assert out2.shape == (2, 8, 16, 16)
    assert jnp.allclose(out2, ref2, atol=5e-4, rtol=5e-4), "mismatch (identity skip)"

    print("KERNEL_OK")
</pallas_src>

<mosaic_0001>
module attributes {stable_mosaic.version = 11 : i64} {
  func.func @_conv_stats_kernel(%arg0: i32, %arg1: i32, %arg2: i32, %arg3: memref<128x36xf32, #tpu.memory_space<vmem>>, %arg4: memref<36x8xf32, #tpu.memory_space<vmem>>, %arg5: memref<128x8xf32, #tpu.memory_space<vmem>>, %arg6: memref<1x1x8xf32, #tpu.memory_space<vmem>>, %arg7: memref<1x1x8xf32, #tpu.memory_space<vmem>>) attributes {dimension_semantics = [#tpu.dimension_semantics<parallel>, #tpu.dimension_semantics<parallel>, #tpu.dimension_semantics<arbitrary>], iteration_bounds = array<i64: 1, 1, 1>, scalar_prefetch = 0 : i64, scratch_operands = 0 : i64, tpu.core_type = #tpu.core_type<tc>, window_params = [{transform_indices = @transform_0, window_bounds = array<i64: 128, 36>}, {transform_indices = @transform_1, window_bounds = array<i64: 36, 8>}, {transform_indices = @transform_2, window_bounds = array<i64: 128, 8>}, {transform_indices = @transform_3, window_bounds = array<i64: 1, 1, 8>}, {transform_indices = @transform_4, window_bounds = array<i64: 1, 1, 8>}]} {
    %c0 = arith.constant 0 : index
    %c0_0 = arith.constant 0 : index
    %0 = vector.load %arg3[%c0, %c0_0] : memref<128x36xf32, #tpu.memory_space<vmem>>, vector<128x36xf32>
    %c0_i32 = arith.constant 0 : i32
    %1 = arith.cmpi eq, %arg2, %c0_i32 : i32
    %2 = arith.extui %1 : i1 to i32
    %c0_i32_1 = arith.constant 0 : i32
    %3 = arith.cmpi ne, %2, %c0_i32_1 : i32
    scf.if %3 {
      %cst_10 = arith.constant 0.000000e+00 : f32
      %12 = vector.broadcast %cst_10 : f32 to vector<128x8xf32>
      %c0_11 = arith.constant 0 : index
      %c0_12 = arith.constant 0 : index
      %13 = vector.load %arg5[%c0_11, %c0_12] : memref<128x8xf32, #tpu.memory_space<vmem>>, vector<128x8xf32>
      tpu.vector_store %arg5[%c0_11, %c0_12], %12 {strides = array<i32>} : memref<128x8xf32, #tpu.memory_space<vmem>>, vector<128x8xf32>,
    } else {
    }
    %c0_2 = arith.constant 0 : index
    %c0_3 = arith.constant 0 : index
    %4 = vector.load %arg5[%c0_2, %c0_3] : memref<128x8xf32, #tpu.memory_space<vmem>>, vector<128x8xf32>
    %c0_4 = arith.constant 0 : index
    %c0_5 = arith.constant 0 : index
    %5 = vector.load %arg4[%c0_4, %c0_5] : memref<36x8xf32, #tpu.memory_space<vmem>>, vector<36x8xf32>
    %cst = arith.constant dense<0.000000e+00> : vector<128x8xf32>
    %6 = tpu.matmul %0, %5, %cst {dimension_numbers = #tpu.dot_dimension_numbers<[1], [0], [0], [1], [0, 0, 1, 1], [], []>} : vector<128x36xf32>, vector<36x8xf32>, vector<128x8xf32> -> vector<128x8xf32>
    %7 = arith.addf %4, %6 : vector<128x8xf32>
    %c0_6 = arith.constant 0 : index
    %c0_7 = arith.constant 0 : index
    %8 = vector.load %arg5[%c0_6, %c0_7] : memref<128x8xf32, #tpu.memory_space<vmem>>, vector<128x8xf32>
    tpu.vector_store %arg5[%c0_6, %c0_7], %7 {strides = array<i32>} : memref<128x8xf32, #tpu.memory_space<vmem>>, vector<128x8xf32>,
    %c0_i32_8 = arith.constant 0 : i32
    %9 = arith.cmpi eq, %arg2, %c0_i32_8 : i32
    %10 = arith.extui %9 : i1 to i32
    %c0_i32_9 = arith.constant 0 : i32
    %11 = arith.cmpi ne, %10, %c0_i32_9 : i32
    scf.if %11 {
      %c0_10 = arith.constant 0 : index
      %c0_11 = arith.constant 0 : index
      %12 = vector.load %arg5[%c0_10, %c0_11] : memref<128x8xf32, #tpu.memory_space<vmem>>, vector<128x8xf32>
      %cst_12 = arith.constant dense<0.000000e+00> : vector<8xf32>
      %13 = vector.multi_reduction <add>, %12, %cst_12 [0] : vector<128x8xf32> to vector<8xf32>
      %14 = vector.shape_cast %13 : vector<8xf32> to vector<1x8xf32>
      %15 = vector.shape_cast %14 : vector<1x8xf32> to vector<1x1x8xf32>
      %c0_13 = arith.constant 0 : index
      %c0_14 = arith.constant 0 : index
      %c0_15 = arith.constant 0 : index
      %16 = vector.load %arg6[%c0_13, %c0_14, %c0_15] : memref<1x1x8xf32, #tpu.memory_space<vmem>>, vector<1x1x8xf32>
      tpu.vector_store %arg6[%c0_13, %c0_14, %c0_15], %15 {strides = array<i32>} : memref<1x1x8xf32, #tpu.memory_space<vmem>>, vector<1x1x8xf32>,
      %17 = arith.mulf %12, %12 : vector<128x8xf32>
      %cst_16 = arith.constant dense<0.000000e+00> : vector<8xf32>
      %18 = vector.multi_reduction <add>, %17, %cst_16 [0] : vector<128x8xf32> to vector<8xf32>
      %19 = vector.shape_cast %18 : vector<8xf32> to vector<1x8xf32>
      %20 = vector.shape_cast %19 : vector<1x8xf32> to vector<1x1x8xf32>
      %c0_17 = arith.constant 0 : index
      %c0_18 = arith.constant 0 : index
      %c0_19 = arith.constant 0 : index
      %21 = vector.load %arg7[%c0_17, %c0_18, %c0_19] : memref<1x1x8xf32, #tpu.memory_space<vmem>>, vector<1x1x8xf32>
      tpu.vector_store %arg7[%c0_17, %c0_18, %c0_19], %20 {strides = array<i32>} : memref<1x1x8xf32, #tpu.memory_space<vmem>>, vector<1x1x8xf32>,
    } else {
    }
    return
  }
  func.func @transform_0(%arg0: i32, %arg1: i32, %arg2: i32) -> (i32, i32) {
    %c0_i32 = arith.constant 0 : i32
    return %arg1, %arg2 : i32, i32
  }
  func.func @transform_1(%arg0: i32, %arg1: i32, %arg2: i32) -> (i32, i32) {
    %c0_i32 = arith.constant 0 : i32
    return %arg2, %arg0 : i32, i32
  }
  func.func @transform_2(%arg0: i32, %arg1: i32, %arg2: i32) -> (i32, i32) {
    %c0_i32 = arith.constant 0 : i32
    return %arg1, %arg0 : i32, i32
  }
  func.func @transform_3(%arg0: i32, %arg1: i32, %arg2: i32) -> (i32, i32, i32) {
    %c0_i32 = arith.constant 0 : i32
    %c0_i32_0 = arith.constant 0 : i32
    return %arg1, %c0_i32, %arg0 : i32, i32, i32
  }
  func.func @transform_4(%arg0: i32, %arg1: i32, %arg2: i32) -> (i32, i32, i32) {
    %c0_i32 = arith.constant 0 : i32
    %c0_i32_0 = arith.constant 0 : i32
    return %arg1, %c0_i32, %arg0 : i32, i32, i32
  }
}

module attributes {stable_mosaic.version = 11 : i64} {
  func.func @_conv_affine_stats_kernel(%arg0: i32, %arg1: i32, %arg2: i32, %arg3: memref<128x72xf32, #tpu.memory_space<vmem>>, %arg4: memref<72x8xf32, #tpu.memory_space<vmem>>, %arg5: memref<1x72xf32, #tpu.memory_space<vmem>>, %arg6: memref<1x72xf32, #tpu.memory_space<vmem>>, %arg7: memref<128x8xf32, #tpu.memory_space<vmem>>, %arg8: memref<1x1x8xf32, #tpu.memory_space<vmem>>, %arg9: memref<1x1x8xf32, #tpu.memory_space<vmem>>) attributes {dimension_semantics = [#tpu.dimension_semantics<parallel>, #tpu.dimension_semantics<parallel>, #tpu.dimension_semantics<arbitrary>], iteration_bounds = array<i64: 1, 1, 1>, scalar_prefetch = 0 : i64, scratch_operands = 0 : i64, tpu.core_type = #tpu.core_type<tc>, window_params = [{transform_indices = @transform_0, window_bounds = array<i64: 128, 72>}, {transform_indices = @transform_1, window_bounds = array<i64: 72, 8>}, {transform_indices = @transform_2, window_bounds = array<i64: 1, 72>}, {transform_indices = @transform_3, window_bounds = array<i64: 1, 72>}, {transform_indices = @transform_4, window_bounds = array<i64: 128, 8>}, {transform_indices = @transform_5, window_bounds = array<i64: 1, 1, 8>}, {transform_indices = @transform_6, window_bounds = array<i64: 1, 1, 8>}]} {
    %c0 = arith.constant 0 : index
    %c0_0 = arith.constant 0 : index
    %0 = vector.load %arg3[%c0, %c0_0] : memref<128x72xf32, #tpu.memory_space<vmem>>, vector<128x72xf32>
    %c0_1 = arith.constant 0 : index
    %c0_2 = arith.constant 0 : index
    %1 = vector.load %arg5[%c0_1, %c0_2] : memref<1x72xf32, #tpu.memory_space<vmem>>, vector<1x72xf32>
    %2 = vector.broadcast %1 : vector<1x72xf32> to vector<128x72xf32>
    %3 = arith.mulf %0, %2 : vector<128x72xf32>
    %c0_3 = arith.constant 0 : index
    %c0_4 = arith.constant 0 : index
    %4 = vector.load %arg6[%c0_3, %c0_4] : memref<1x72xf32, #tpu.memory_space<vmem>>, vector<1x72xf32>
    %5 = vector.broadcast %4 : vector<1x72xf32> to vector<128x72xf32>
    %6 = arith.addf %3, %5 : vector<128x72xf32>
    %cst = arith.constant 0.000000e+00 : f32
    %7 = vector.broadcast %cst : f32 to vector<128x72xf32>
    %8 = arith.maximumf %6, %7 : vector<128x72xf32>
    %c0_i32 = arith.constant 0 : i32
    %9 = arith.cmpi eq, %arg2, %c0_i32 : i32
    %10 = arith.extui %9 : i1 to i32
    %c0_i32_5 = arith.constant 0 : i32
    %11 = arith.cmpi ne, %10, %c0_i32_5 : i32
    scf.if %11 {
      %cst_15 = arith.constant 0.000000e+00 : f32
      %20 = vector.broadcast %cst_15 : f32 to vector<128x8xf32>
      %c0_16 = arith.constant 0 : index
      %c0_17 = arith.constant 0 : index
      %21 = vector.load %arg7[%c0_16, %c0_17] : memref<128x8xf32, #tpu.memory_space<vmem>>, vector<128x8xf32>
      tpu.vector_store %arg7[%c0_16, %c0_17], %20 {strides = array<i32>} : memref<128x8xf32, #tpu.memory_space<vmem>>, vector<128x8xf32>,
    } else {
    }
    %c0_6 = arith.constant 0 : index
    %c0_7 = arith.constant 0 : index
    %12 = vector.load %arg7[%c0_6, %c0_7] : memref<128x8xf32, #tpu.memory_space<vmem>>, vector<128x8xf32>
    %c0_8 = arith.constant 0 : index
    %c0_9 = arith.constant 0 : index
    %13 = vector.load %arg4[%c0_8, %c0_9] : memref<72x8xf32, #tpu.memory_space<vmem>>, vector<72x8xf32>
    %cst_10 = arith.constant dense<0.000000e+00> : vector<128x8xf32>
    %14 = tpu.matmul %8, %13, %cst_10 {dimension_numbers = #tpu.dot_dimension_numbers<[1], [0], [0], [1], [0, 0, 1, 1], [], []>} : vector<128x72xf32>, vector<72x8xf32>, vector<128x8xf32> -> vector<128x8xf32>
    %15 = arith.addf %12, %14 : vector<128x8xf32>
    %c0_11 = arith.constant 0 : index
    %c0_12 = arith.constant 0 : index
    %16 = vector.load %arg7[%c0_11, %c0_12] : memref<128x8xf32, #tpu.memory_space<vmem>>, vector<128x8xf32>
    tpu.vector_store %arg7[%c0_11, %c0_12], %15 {strides = array<i32>} : memref<128x8xf32, #tpu.memory_space<vmem>>, vector<128x8xf32>,
    %c0_i32_13 = arith.constant 0 : i32
    %17 = arith.cmpi eq, %arg2, %c0_i32_13 : i32
    %18 = arith.extui %17 : i1 to i32
    %c0_i32_14 = arith.constant 0 : i32
    %19 = arith.cmpi ne, %18, %c0_i32_14 : i32
    scf.if %19 {
      %c0_15 = arith.constant 0 : index
      %c0_16 = arith.constant 0 : index
      %20 = vector.load %arg7[%c0_15, %c0_16] : memref<128x8xf32, #tpu.memory_space<vmem>>, vector<128x8xf32>
      %cst_17 = arith.constant dense<0.000000e+00> : vector<8xf32>
      %21 = vector.multi_reduction <add>, %20, %cst_17 [0] : vector<128x8xf32> to vector<8xf32>
      %22 = vector.shape_cast %21 : vector<8xf32> to vector<1x8xf32>
      %23 = vector.shape_cast %22 : vector<1x8xf32> to vector<1x1x8xf32>
      %c0_18 = arith.constant 0 : index
      %c0_19 = arith.constant 0 : index
      %c0_20 = arith.constant 0 : index
      %24 = vector.load %arg8[%c0_18, %c0_19, %c0_20] : memref<1x1x8xf32, #tpu.memory_space<vmem>>, vector<1x1x8xf32>
      tpu.vector_store %arg8[%c0_18, %c0_19, %c0_20], %23 {strides = array<i32>} : memref<1x1x8xf32, #tpu.memory_space<vmem>>, vector<1x1x8xf32>,
      %25 = arith.mulf %20, %20 : vector<128x8xf32>
      %cst_21 = arith.constant dense<0.000000e+00> : vector<8xf32>
      %26 = vector.multi_reduction <add>, %25, %cst_21 [0] : vector<128x8xf32> to vector<8xf32>
      %27 = vector.shape_cast %26 : vector<8xf32> to vector<1x8xf32>
      %28 = vector.shape_cast %27 : vector<1x8xf32> to vector<1x1x8xf32>
      %c0_22 = arith.constant 0 : index
      %c0_23 = arith.constant 0 : index
      %c0_24 = arith.constant 0 : index
      %29 = vector.load %arg9[%c0_22, %c0_23, %c0_24] : memref<1x1x8xf32, #tpu.memory_space<vmem>>, vector<1x1x8xf32>
      tpu.vector_store %arg9[%c0_22, %c0_23, %c0_24], %28 {strides = array<i32>} : memref<1x1x8xf32, #tpu.memory_space<vmem>>, vector<1x1x8xf32>,
    } else {
    }
    return
  }
  func.func @transform_0(%arg0: i32, %arg1: i32, %arg2: i32) -> (i32, i32) {
    %c0_i32 = arith.constant 0 : i32
    return %arg1, %arg2 : i32, i32
  }
  func.func @transform_1(%arg0: i32, %arg1: i32, %arg2: i32) -> (i32, i32) {
    %c0_i32 = arith.constant 0 : i32
    return %arg2, %arg0 : i32, i32
  }
  func.func @transform_2(%arg0: i32, %arg1: i32, %arg2: i32) -> (i32, i32) {
    %c0_i32 = arith.constant 0 : i32
    %c0_i32_0 = arith.constant 0 : i32
    return %c0_i32, %arg2 : i32, i32
  }
  func.func @transform_3(%arg0: i32, %arg1: i32, %arg2: i32) -> (i32, i32) {
    %c0_i32 = arith.constant 0 : i32
    %c0_i32_0 = arith.constant 0 : i32
    return %c0_i32, %arg2 : i32, i32
  }
  func.func @transform_4(%arg0: i32, %arg1: i32, %arg2: i32) -> (i32, i32) {
    %c0_i32 = arith.constant 0 : i32
    return %arg1, %arg0 : i32, i32
  }
  func.func @transform_5(%arg0: i32, %arg1: i32, %arg2: i32) -> (i32, i32, i32) {
    %c0_i32 = arith.constant 0 : i32
    %c0_i32_0 = arith.constant 0 : i32
    return %arg1, %c0_i32, %arg0 : i32, i32, i32
  }
  func.func @transform_6(%arg0: i32, %arg1: i32, %arg2: i32) -> (i32, i32, i32) {
    %c0_i32 = arith.constant 0 : i32
    %c0_i32_0 = arith.constant 0 : i32
    return %arg1, %c0_i32, %arg0 : i32, i32, i32
  }
}

module attributes {stable_mosaic.version = 11 : i64} {
  func.func @_bn2_skipconv_add_relu_kernel(%arg0: i32, %arg1: memref<128x8xf32, #tpu.memory_space<vmem>>, %arg2: memref<128x4xf32, #tpu.memory_space<vmem>>, %arg3: memref<4x8xf32, #tpu.memory_space<vmem>>, %arg4: memref<1x8xf32, #tpu.memory_space<vmem>>, %arg5: memref<1x8xf32, #tpu.memory_space<vmem>>, %arg6: memref<1x8xf32, #tpu.memory_space<vmem>>, %arg7: memref<1x8xf32, #tpu.memory_space<vmem>>, %arg8: memref<1x8xf32, #tpu.memory_space<vmem>>, %arg9: memref<1x8xf32, #tpu.memory_space<vmem>>, %arg10: memref<1x8xf32, #tpu.memory_space<vmem>>, %arg11: memref<1x8xf32, #tpu.memory_space<vmem>>, %arg12: memref<128x8xf32, #tpu.memory_space<vmem>>) attributes {dimension_semantics = [#tpu.dimension_semantics<parallel>], iteration_bounds = array<i64: 1>, scalar_prefetch = 0 : i64, scratch_operands = 0 : i64, tpu.core_type = #tpu.core_type<tc>, window_params = [{transform_indices = @transform_0, window_bounds = array<i64: 128, 8>}, {transform_indices = @transform_1, window_bounds = array<i64: 128, 4>}, {pipeline_mode = #tpu.pipeline_mode<synchronous>, transform_indices = @transform_2, window_bounds = array<i64: 4, 8>}, {pipeline_mode = #tpu.pipeline_mode<synchronous>, transform_indices = @transform_3, window_bounds = array<i64: 1, 8>}, {pipeline_mode = #tpu.pipeline_mode<synchronous>, transform_indices = @transform_4, window_bounds = array<i64: 1, 8>}, {pipeline_mode = #tpu.pipeline_mode<synchronous>, transform_indices = @transform_5, window_bounds = array<i64: 1, 8>}, {pipeline_mode = #tpu.pipeline_mode<synchronous>, transform_indices = @transform_6, window_bounds = array<i64: 1, 8>}, {pipeline_mode = #tpu.pipeline_mode<synchronous>, transform_indices = @transform_7, window_bounds = array<i64: 1, 8>}, {pipeline_mode = #tpu.pipeline_mode<synchronous>, transform_indices = @transform_8, window_bounds = array<i64: 1, 8>}, {pipeline_mode = #tpu.pipeline_mode<synchronous>, transform_indices = @transform_9, window_bounds = array<i64: 1, 8>}, {pipeline_mode = #tpu.pipeline_mode<synchronous>, transform_indices = @transform_10, window_bounds = array<i64: 1, 8>}, {transform_indices = @transform_11, window_bounds = array<i64: 128, 8>}]} {
    %c0 = arith.constant 0 : index
    %c0_0 = arith.constant 0 : index
    %0 = vector.load %arg4[%c0, %c0_0] : memref<1x8xf32, #tpu.memory_space<vmem>>, vector<1x8xf32>
    %c0_1 = arith.constant 0 : index
    %c0_2 = arith.constant 0 : index
    %1 = vector.load %arg5[%c0_1, %c0_2] : memref<1x8xf32, #tpu.memory_space<vmem>>, vector<1x8xf32>
    %c0_3 = arith.constant 0 : index
    %c0_4 = arith.constant 0 : index
    %2 = vector.load %arg6[%c0_3, %c0_4] : memref<1x8xf32, #tpu.memory_space<vmem>>, vector<1x8xf32>
    %c0_5 = arith.constant 0 : index
    %c0_6 = arith.constant 0 : index
    %3 = vector.load %arg7[%c0_5, %c0_6] : memref<1x8xf32, #tpu.memory_space<vmem>>, vector<1x8xf32>
    %cst = arith.constant 7.812500e-03 : f32
    %4 = vector.broadcast %cst : f32 to vector<1x8xf32>
    %5 = arith.mulf %0, %4 : vector<1x8xf32>
    %cst_7 = arith.constant 7.812500e-03 : f32
    %6 = vector.broadcast %cst_7 : f32 to vector<1x8xf32>
    %7 = arith.mulf %1, %6 : vector<1x8xf32>
    %8 = arith.mulf %5, %5 : vector<1x8xf32>
    %9 = arith.subf %7, %8 : vector<1x8xf32>
    %cst_8 = arith.constant 0.000000e+00 : f32
    %10 = vector.broadcast %cst_8 : f32 to vector<1x8xf32>
    %11 = arith.maximumf %9, %10 : vector<1x8xf32>
    %cst_9 = arith.constant 9.99999974E-6 : f32
    %12 = vector.broadcast %cst_9 : f32 to vector<1x8xf32>
    %13 = arith.addf %11, %12 : vector<1x8xf32>
    %14 = math.rsqrt %13 : vector<1x8xf32>
    %15 = arith.mulf %2, %14 : vector<1x8xf32>
    %16 = arith.mulf %5, %15 : vector<1x8xf32>
    %17 = arith.subf %3, %16 : vector<1x8xf32>
    %c0_10 = arith.constant 0 : index
    %c0_11 = arith.constant 0 : index
    %18 = vector.load %arg8[%c0_10, %c0_11] : memref<1x8xf32, #tpu.memory_space<vmem>>, vector<1x8xf32>
    %c0_12 = arith.constant 0 : index
    %c0_13 = arith.constant 0 : index
    %19 = vector.load %arg9[%c0_12, %c0_13] : memref<1x8xf32, #tpu.memory_space<vmem>>, vector<1x8xf32>
    %c0_14 = arith.constant 0 : index
    %c0_15 = arith.constant 0 : index
    %20 = vector.load %arg10[%c0_14, %c0_15] : memref<1x8xf32, #tpu.memory_space<vmem>>, vector<1x8xf32>
    %c0_16 = arith.constant 0 : index
    %c0_17 = arith.constant 0 : index
    %21 = vector.load %arg11[%c0_16, %c0_17] : memref<1x8xf32, #tpu.memory_space<vmem>>, vector<1x8xf32>
    %cst_18 = arith.constant 7.812500e-03 : f32
    %22 = vector.broadcast %cst_18 : f32 to vector<1x8xf32>
    %23 = arith.mulf %18, %22 : vector<1x8xf32>
    %cst_19 = arith.constant 7.812500e-03 : f32
    %24 = vector.broadcast %cst_19 : f32 to vector<1x8xf32>
    %25 = arith.mulf %19, %24 : vector<1x8xf32>
    %26 = arith.mulf %23, %23 : vector<1x8xf32>
    %27 = arith.subf %25, %26 : vector<1x8xf32>
    %cst_20 = arith.constant 0.000000e+00 : f32
    %28 = vector.broadcast %cst_20 : f32 to vector<1x8xf32>
    %29 = arith.maximumf %27, %28 : vector<1x8xf32>
    %cst_21 = arith.constant 9.99999974E-6 : f32
    %30 = vector.broadcast %cst_21 : f32 to vector<1x8xf32>
    %31 = arith.addf %29, %30 : vector<1x8xf32>
    %32 = math.rsqrt %31 : vector<1x8xf32>
    %33 = arith.mulf %20, %32 : vector<1x8xf32>
    %34 = arith.mulf %23, %33 : vector<1x8xf32>
    %35 = arith.subf %21, %34 : vector<1x8xf32>
    %c0_22 = arith.constant 0 : index
    %c0_23 = arith.constant 0 : index
    %36 = vector.load %arg2[%c0_22, %c0_23] : memref<128x4xf32, #tpu.memory_space<vmem>>, vector<128x4xf32>
    %c0_24 = arith.constant 0 : index
    %c0_25 = arith.constant 0 : index
    %37 = vector.load %arg3[%c0_24, %c0_25] : memref<4x8xf32, #tpu.memory_space<vmem>>, vector<4x8xf32>
    %cst_26 = arith.constant dense<0.000000e+00> : vector<128x8xf32>
    %38 = tpu.matmul %36, %37, %cst_26 {dimension_numbers = #tpu.dot_dimension_numbers<[1], [0], [0], [1], [0, 0, 1, 1], [], []>} : vector<128x4xf32>, vector<4x8xf32>, vector<128x8xf32> -> vector<128x8xf32>
    %c0_27 = arith.constant 0 : index
    %c0_28 = arith.constant 0 : index
    %39 = vector.load %arg1[%c0_27, %c0_28] : memref<128x8xf32, #tpu.memory_space<vmem>>, vector<128x8xf32>
    %40 = vector.broadcast %15 : vector<1x8xf32> to vector<128x8xf32>
    %41 = arith.mulf %39, %40 : vector<128x8xf32>
    %42 = vector.broadcast %33 : vector<1x8xf32> to vector<128x8xf32>
    %43 = arith.mulf %38, %42 : vector<128x8xf32>
    %44 = arith.addf %41, %43 : vector<128x8xf32>
    %45 = arith.addf %17, %35 : vector<1x8xf32>
    %46 = vector.broadcast %45 : vector<1x8xf32> to vector<128x8xf32>
    %47 = arith.addf %44, %46 : vector<128x8xf32>
    %cst_29 = arith.constant 0.000000e+00 : f32
    %48 = vector.broadcast %cst_29 : f32 to vector<128x8xf32>
    %49 = arith.maximumf %47, %48 : vector<128x8xf32>
    %c0_30 = arith.constant 0 : index
    %c0_31 = arith.constant 0 : index
    %50 = vector.load %arg12[%c0_30, %c0_31] : memref<128x8xf32, #tpu.memory_space<vmem>>, vector<128x8xf32>
    tpu.vector_store %arg12[%c0_30, %c0_31], %49 {strides = array<i32>} : memref<128x8xf32, #tpu.memory_space<vmem>>, vector<128x8xf32>,
    return
  }
  func.func @transform_0(%arg0: i32) -> (i32, i32) {
    %c0_i32 = arith.constant 0 : i32
    %c0_i32_0 = arith.constant 0 : i32
    return %arg0, %c0_i32 : i32, i32
  }
  func.func @transform_1(%arg0: i32) -> (i32, i32) {
    %c0_i32 = arith.constant 0 : i32
    %c0_i32_0 = arith.constant 0 : i32
    return %arg0, %c0_i32 : i32, i32
  }
  func.func @transform_2(%arg0: i32) -> (i32, i32) {
    %c0_i32 = arith.constant 0 : i32
    %c0_i32_0 = arith.constant 0 : i32
    %c0_i32_1 = arith.constant 0 : i32
    return %c0_i32, %c0_i32_0 : i32, i32
  }
  func.func @transform_3(%arg0: i32) -> (i32, i32) {
    %c0_i32 = arith.constant 0 : i32
    %c0_i32_0 = arith.constant 0 : i32
    %c0_i32_1 = arith.constant 0 : i32
    return %c0_i32, %c0_i32_0 : i32, i32
  }
  func.func @transform_4(%arg0: i32) -> (i32, i32) {
    %c0_i32 = arith.constant 0 : i32
    %c0_i32_0 = arith.constant 0 : i32
    %c0_i32_1 = arith.constant 0 : i32
    return %c0_i32, %c0_i32_0 : i32, i32
  }
  func.func @transform_5(%arg0: i32) -> (i32, i32) {
    %c0_i32 = arith.constant 0 : i32
    %c0_i32_0 = arith.constant 0 : i32
    %c0_i32_1 = arith.constant 0 : i32
    return %c0_i32, %c0_i32_0 : i32, i32
  }
  func.func @transform_6(%arg0: i32) -> (i32, i32) {
    %c0_i32 = arith.constant 0 : i32
    %c0_i32_0 = arith.constant 0 : i32
    %c0_i32_1 = arith.constant 0 : i32
    return %c0_i32, %c0_i32_0 : i32, i32
  }
  func.func @transform_7(%arg0: i32) -> (i32, i32) {
    %c0_i32 = arith.constant 0 : i32
    %c0_i32_0 = arith.constant 0 : i32
    %c0_i32_1 = arith.constant 0 : i32
    return %c0_i32, %c0_i32_0 : i32, i32
  }
  func.func @transform_8(%arg0: i32) -> (i32, i32) {
    %c0_i32 = arith.constant 0 : i32
    %c0_i32_0 = arith.constant 0 : i32
    %c0_i32_1 = arith.constant 0 : i32
    return %c0_i32, %c0_i32_0 : i32, i32
  }
  func.func @transform_9(%arg0: i32) -> (i32, i32) {
    %c0_i32 = arith.constant 0 : i32
    %c0_i32_0 = arith.constant 0 : i32
    %c0_i32_1 = arith.constant 0 : i32
    return %c0_i32, %c0_i32_0 : i32, i32
  }
  func.func @transform_10(%arg0: i32) -> (i32, i32) {
    %c0_i32 = arith.constant 0 : i32
    %c0_i32_0 = arith.constant 0 : i32
    %c0_i32_1 = arith.constant 0 : i32
    return %c0_i32, %c0_i32_0 : i32, i32
  }
  func.func @transform_11(%arg0: i32) -> (i32, i32) {
    %c0_i32 = arith.constant 0 : i32
    %c0_i32_0 = arith.constant 0 : i32
    return %arg0, %c0_i32 : i32, i32
  }
}

</mosaic_0001>

<llo_original>
// kernel: residual_forward_pallas.3
$region0: #{residual_forward_pallas.3}
  #allocation0 [shape = 'u32[]', space=smem, size = 0x4, offset = 0x4, fixed_abs, tag = 'smem constant byte address 0x4 - core index']
  #allocation1 [shape = 'u32[144,128]{1,0:T(1,128)}', space=vmem, size = 0x12000, scoped, tag = 'internal scratch']
  %s0 = inlined_call_operand.hbm [shape: f32[128,36], index: 0, kind: input, shape index: {}]
  %s1 = inlined_call_operand.hbm [shape: f32[36,8], index: 1, kind: input, shape index: {}]
  %s2 = inlined_call_operand.hbm [shape: f32[128,8], index: 2, kind: output, shape index: {0}]
  %s3 = inlined_call_operand.hbm [shape: f32[1,1,8], index: 3, kind: output, shape index: {1}]
  %s4 = inlined_call_operand.hbm [shape: f32[1,1,8], index: 4, kind: output, shape index: {2}]
  %5 = xla_tuple %s2, %s3, %s4
  %s6 = sld [smem:[#allocation0]]
  $region50: #{residual_forward_pallas.3} parent=0
    _
  %s8 = ssub.s32 1, %s6
  %s9 = scalar_select 0, %s8, %s6
  $region1: #{residual_forward_pallas.3} parent=0
    #allocation2 [shape = 'u8[65536]{0}', space=vmem, size = 0x10000, scoped, tag = 'input window, operand 0, single buffered']
    #allocation3 [shape = 's32[1]{0}', space=sflag, size = 0x4, scoped, tag = 'scoped memory for residual_forward_pallas.3']
    #allocation4 [shape = 's32[1]{0}', space=sflag, size = 0x4, scoped, tag = 'scoped memory for residual_forward_pallas.3']
    #allocation5 [shape = 'u8[20480]{0}', space=vmem, size = 0x5000, scoped, tag = 'input window, operand 1, single buffered']
    #allocation6 [shape = 's32[1]{0}', space=sflag, size = 0x4, scoped, tag = 'scoped memory for residual_forward_pallas.3']
    #allocation7 [shape = 'u8[65536]{0}', space=vmem, size = 0x10000, scoped, tag = 'output window, operand 0, single buffered']
    #allocation8 [shape = 'u8[512]{0}', space=vmem, size = 0x400, scoped, tag = 'output window, operand 1, single buffered']
    #allocation9 [shape = 's32[1]{0}', space=sflag, size = 0x4, scoped, tag = 'scoped memory for residual_forward_pallas.3']
    #allocation10 [shape = 'u8[512]{0}', space=vmem, size = 0x400, scoped, tag = 'output window, operand 2, single buffered']
    %10 = vsyncpa [#allocation3], 0
    %11 = vsyncpa [#allocation6], 0
    %12 = vsyncpa [#allocation4], 0
    %13 = vsyncpa [#allocation9], 0
    // Predicated region
    $region2: #{residual_forward_pallas.3} parent=1 // pred_check
      _
    $region3: #{residual_forward_pallas.3} parent=1 // pred_check_branch
      %15 = sbr.rel (0) target = $region5
    $region4: #{residual_forward_pallas.3} parent=1 // pred_region
      %s17 = ssub.s32 2048, 2048
      %18 = vsyncadd [#allocation3], %s17
      %s19 = sshll.u32 [#allocation2], 4
      %s20 = int_to_ptr.vmem [resolvable:$true] %s19
      %25 = dma.hbm_to_vmem [thread:$0]  %s0, 2048, %s20, [#allocation3], 128, 128, 8
    $region5: #{residual_forward_pallas.3} parent=1 // pred_fallthru
      _
    // Predicated region
    $region6: #{residual_forward_pallas.3} parent=1 // pred_check
      _
    $region7: #{residual_forward_pallas.3} parent=1 // pred_check_branch
      %27 = sbr.rel (0) target = $region9
    $region8: #{residual_forward_pallas.3} parent=1 // pred_region
      %s29 = ssub.s32 640, 640
      %30 = vsyncadd [#allocation6], %s29
      %s31 = sshll.u32 [#allocation5], 4
      %s32 = int_to_ptr.vmem [resolvable:$true] %s31
      %37 = dma.hbm_to_vmem [thread:$0]  %s1, 640, %s32, [#allocation6], 128, 128, 8
    $region9: #{residual_forward_pallas.3} parent=1 // pred_fallthru
      _
    // Predicated region
    $region10: #{residual_forward_pallas.3} parent=1 // pred_check
      _
    $region11: #{residual_forward_pallas.3} parent=1 // pred_check_branch
      %39 = sbr.rel (0) target = $region13
    $region12: #{residual_forward_pallas.3} parent=1 // pred_region
      %40 = dma.done [#allocation3], 2048
    $region13: #{residual_forward_pallas.3} parent=1 // pred_fallthru
      _
    // Predicated region
    $region14: #{residual_forward_pallas.3} parent=1 // pred_check
      _
    $region15: #{residual_forward_pallas.3} parent=1 // pred_check_branch
      %42 = sbr.rel (0) target = $region17
    $region16: #{residual_forward_pallas.3} parent=1 // pred_region
      %43 = dma.done [#allocation6], 640
    $region17: #{residual_forward_pallas.3} parent=1 // pred_fallthru
      _
    %v44 = vld [vmem:[#allocation2] sm:$0xff]
    %v45 = vld [vmem:[#allocation2 + $0x8] sm:$0xff]
    %v46 = vld [vmem:[#allocation2 + $0x10] sm:$0xff]
    %v47 = vld [vmem:[#allocation2 + $0x18] sm:$0xff]
    %v48 = vld [vmem:[#allocation2 + $0x20] sm:$0xff]
    %v49 = vld [vmem:[#allocation2 + $0x28] sm:$0xff]
    %v50 = vld [vmem:[#allocation2 + $0x30] sm:$0xff]
    %v51 = vld [vmem:[#allocation2 + $0x38] sm:$0xff]
    %v52 = vld [vmem:[#allocation2 + $0x40] sm:$0xff]
    %v53 = vld [vmem:[#allocation2 + $0x48] sm:$0xff]
    %v54 = vld [vmem:[#allocation2 + $0x50] sm:$0xff]
    %v55 = vld [vmem:[#allocation2 + $0x58] sm:$0xff]
    %v56 = vld [vmem:[#allocation2 + $0x60] sm:$0xff]
    %v57 = vld [vmem:[#allocation2 + $0x68] sm:$0xff]
    %v58 = vld [vmem:[#allocation2 + $0x70] sm:$0xff]
    %v59 = vld [vmem:[#allocation2 + $0x78] sm:$0xff]
    %p60 = scmp.eq.s32.totalorder 0, 0
    // Predicated region
    $region18: #{residual_forward_pallas.3} parent=1 // pred_check
      %p61 = pneg %p60
    $region19: #{residual_forward_pallas.3} parent=1 // pred_check_branch
      %63 = sbr.rel (%p61) target = $region21
    $region20: #{residual_forward_pallas.3} parent=1 // pred_region
      %vm64 = vcmask 64512
      %65 = vst.msk [vmem:[#allocation7] sm:$0xff] %vm64, 0.0
      %66 = vst.msk [vmem:[#allocation7 + $0x8] sm:$0xff] %vm64, 0.0
      %67 = vst.msk [vmem:[#allocation7 + $0x10] sm:$0xff] %vm64, 0.0
      %68 = vst.msk [vmem:[#allocation7 + $0x18] sm:$0xff] %vm64, 0.0
      %69 = vst.msk [vmem:[#allocation7 + $0x20] sm:$0xff] %vm64, 0.0
      %70 = vst.msk [vmem:[#allocation7 + $0x28] sm:$0xff] %vm64, 0.0
      %71 = vst.msk [vmem:[#allocation7 + $0x30] sm:$0xff] %vm64, 0.0
      %72 = vst.msk [vmem:[#allocation7 + $0x38] sm:$0xff] %vm64, 0.0
      %73 = vst.msk [vmem:[#allocation7 + $0x40] sm:$0xff] %vm64, 0.0
      %74 = vst.msk [vmem:[#allocation7 + $0x48] sm:$0xff] %vm64, 0.0
      %75 = vst.msk [vmem:[#allocation7 + $0x50] sm:$0xff] %vm64, 0.0
      %76 = vst.msk [vmem:[#allocation7 + $0x58] sm:$0xff] %vm64, 0.0
      %77 = vst.msk [vmem:[#allocation7 + $0x60] sm:$0xff] %vm64, 0.0
      %78 = vst.msk [vmem:[#allocation7 + $0x68] sm:$0xff] %vm64, 0.0
      %79 = vst.msk [vmem:[#allocation7 + $0x70] sm:$0xff] %vm64, 0.0
      %80 = vst.msk [vmem:[#allocation7 + $0x78] sm:$0xff] %vm64, 0.0
    $region21: #{residual_forward_pallas.3} parent=1 // pred_fallthru
      _
    %v81 = vld [vmem:[#allocation7] sm:$0xff]
    %v82 = vld [vmem:[#allocation7 + $0x8] sm:$0xff]
    %v83 = vld [vmem:[#allocation7 + $0x10] sm:$0xff]
    %v84 = vld [vmem:[#allocation7 + $0x18] sm:$0xff]
    %v85 = vld [vmem:[#allocation7 + $0x20] sm:$0xff]
    %v86 = vld [vmem:[#allocation7 + $0x28] sm:$0xff]
    %v87 = vld [vmem:[#allocation7 + $0x30] sm:$0xff]
    %v88 = vld [vmem:[#allocation7 + $0x38] sm:$0xff]
    %v89 = vld [vmem:[#allocation7 + $0x40] sm:$0xff]
    %v90 = vld [vmem:[#allocation7 + $0x48] sm:$0xff]
    %v91 = vld [vmem:[#allocation7 + $0x50] sm:$0xff]
    %v92 = vld [vmem:[#allocation7 + $0x58] sm:$0xff]
    %v93 = vld [vmem:[#allocation7 + $0x60] sm:$0xff]
    %v94 = vld [vmem:[#allocation7 + $0x68] sm:$0xff]
    %v95 = vld [vmem:[#allocation7 + $0x70] sm:$0xff]
    %v96 = vld [vmem:[#allocation7 + $0x78] sm:$0xff]
    %v97 = vld [vmem:[#allocation5] sm:$0xff]
    %v98 = vld [vmem:[#allocation5 + $0x8] sm:$0xff]
    %v99 = vld [vmem:[#allocation5 + $0x10] sm:$0xff]
    %v100 = vld [vmem:[#allocation5 + $0x18] sm:$0xff]
    %v101 = vld [vmem:[#allocation5 + $0x20] sm:$0xf]
    %vm102 = vcmask 293888
    %v104 = vsel %vm102, %v44, 0
    %v107 = vsel %vm102, %v45, 0
    %v110 = vsel %vm102, %v46, 0
    %v113 = vsel %vm102, %v47, 0
    %v116 = vsel %vm102, %v48, 0
    %v119 = vsel %vm102, %v49, 0
    %v122 = vsel %vm102, %v50, 0
    %v125 = vsel %vm102, %v51, 0
    %v128 = vsel %vm102, %v52, 0
    %v131 = vsel %vm102, %v53, 0
    %v134 = vsel %vm102, %v54, 0
    %v137 = vsel %vm102, %v55, 0
    %v140 = vsel %vm102, %v56, 0
    %v143 = vsel %vm102, %v57, 0
    %v146 = vsel %vm102, %v58, 0
    %v149 = vsel %vm102, %v59, 0
    %vm151 = vcmask 1043456
    %v153 = vsel %vm151, %v101, 0
    %155 = vmatprep.subr.mxu0 0.0
    %156 = vmatpush1.msra.mxu0 %v97
    %157 = vmatprep.subr.mxu0 0.0
    %158 = vmatpush1.msra.mxu0 %v98
    %159 = vmatprep.subr.mxu0 0.0
    %160 = vmatpush1.msra.mxu0 %v99
    %161 = vmatprep.subr.mxu0 0.0
    %162 = vmatpush1.msra.mxu0 %v100
    %163 = vmatprep.subr.mxu0 0.0
    %164 = vmatpush1.msra.mxu0 %v153
    %165 = vmatprep.subr.mxu0 0.0
    %166 = vmatpush1.msra.mxu0 0.0
    %167 = vmatprep.subr.mxu0 0.0
    %168 = vmatpush1.msra.mxu0 0.0
    %169 = vmatprep.subr.mxu0 0.0
    %170 = vmatpush1.msra.mxu0 0.0
    %171 = vmatprep.subr.mxu0 0.0
    %172 = vmatpush1.msra.mxu0 0.0
    %173 = vmatprep.subr.mxu0 0.0
    %174 = vmatpush1.msra.mxu0 0.0
    %175 = vmatprep.subr.mxu0 0.0
    %176 = vmatpush1.msra.mxu0 0.0
    %177 = vmatprep.subr.mxu0 0.0
    %178 = vmatpush1.msra.mxu0 0.0
    %179 = vmatprep.subr.mxu0 0.0
    %180 = vmatpush1.msra.mxu0 0.0
    %181 = vmatprep.subr.mxu0 0.0
    %182 = vmatpush1.msra.mxu0 0.0
    %183 = vmatprep.subr.mxu0 0.0
    %184 = vmatpush1.msra.mxu0 0.0
    %185 = vmatprep.subr.mxu0 0.0
    %186 = vmatpush1.msra.mxu0 0.0
    %187 = vmatprep.subr.mxu0 0.0
    %188 = vmatpush1.msra.mxu0 0.0
    %189 = vmatprep.subr.mxu0 0.0
    %190 = vmatpush1.msra.mxu0 0.0
    %191 = vmatprep.subr.mxu0 0.0
    %192 = vmatpush1.msra.mxu0 0.0
    %193 = vmatprep.subr.mxu0 0.0
    %194 = vmatpush1.msra.mxu0 0.0
    %195 = vmatprep.subr.mxu0 0.0
    %196 = vmatpush1.msra.mxu0 0.0
    %197 = vmatprep.subr.mxu0 0.0
    %198 = vmatpush1.msra.mxu0 0.0
    %199 = vmatprep.subr.mxu0 0.0
    %200 = vmatpush1.msra.mxu0 0.0
    %201 = vmatprep.subr.mxu0 0.0
    %202 = vmatpush1.msra.mxu0 0.0
    %203 = vmatprep.subr.mxu0 0.0
    %204 = vmatpush1.msra.mxu0 0.0
    %205 = vmatprep.subr.mxu0 0.0
    %206 = vmatpush1.msra.mxu0 0.0
    %207 = vmatprep.subr.mxu0 0.0
    %208 = vmatpush1.msra.mxu0 0.0
    %209 = vmatprep.subr.mxu0 0.0
    %210 = vmatpush1.msra.mxu0 0.0
    %211 = vmatprep.subr.mxu0 0.0
    %212 = vmatpush1.msra.mxu0 0.0
    %213 = vmatprep.subr.mxu0 0.0
    %214 = vmatpush1.msra.mxu0 0.0
    %215 = vmatprep.subr.mxu0 0.0
    %216 = vmatpush1.msra.mxu0 0.0
    %217 = vmatprep.subr.mxu0 0.0
    %218 = vmatpush1.msra.mxu0 0.0
    %219 = vmatprep.mubr.f32.mxu0 0.0
    %220 = vmatmul.mubr.f32.gmra.mrb[0].mxu0 %v104
    %v221 = vpop.f32.mrb[0].mxu0
    %v222 = vadd.f32 0.0, %v221
    %v223 = vpop.f32.mrb[0].mxu0
    %224 = vmatprep.mubr.f32.mxu0 0.0
    %225 = vmatmul.mubr.f32.gmra.mrb[0].mxu0 %v107
    %v226 = vpop.f32.mrb[0].mxu0
    %v227 = vadd.f32 0.0, %v226
    %v228 = vpop.f32.mrb[0].mxu0
    %229 = vmatprep.mubr.f32.mxu0 0.0
    %230 = vmatmul.mubr.f32.gmra.mrb[0].mxu0 %v110
    %v231 = vpop.f32.mrb[0].mxu0
    %v232 = vadd.f32 0.0, %v231
    %v233 = vpop.f32.mrb[0].mxu0
    %234 = vmatprep.mubr.f32.mxu0 0.0
    %235 = vmatmul.mubr.f32.gmra.mrb[0].mxu0 %v113
    %v236 = vpop.f32.mrb[0].mxu0
    %v237 = vadd.f32 0.0, %v236
    %v238 = vpop.f32.mrb[0].mxu0
    %239 = vmatprep.mubr.f32.mxu0 0.0
    %240 = vmatmul.mubr.f32.gmra.mrb[0].mxu0 %v116
    %v241 = vpop.f32.mrb[0].mxu0
    %v242 = vadd.f32 0.0, %v241
    %v243 = vpop.f32.mrb[0].mxu0
    %244 = vmatprep.mubr.f32.mxu0 0.0
    %245 = vmatmul.mubr.f32.gmra.mrb[0].mxu0 %v119
    %v246 = vpop.f32.mrb[0].mxu0
    %v247 = vadd.f32 0.0, %v246
    %v248 = vpop.f32.mrb[0].mxu0
    %249 = vmatprep.mubr.f32.mxu0 0.0
    %250 = vmatmul.mubr.f32.gmra.mrb[0].mxu0 %v122
    %v251 = vpop.f32.mrb[0].mxu0
    %v252 = vadd.f32 0.0, %v251
    %v253 = vpop.f32.mrb[0].mxu0
    %254 = vmatprep.mubr.f32.mxu0 0.0
    %255 = vmatmul.mubr.f32.gmra.mrb[0].mxu0 %v125
    %v256 = vpop.f32.mrb[0].mxu0
    %v257 = vadd.f32 0.0, %v256
    %v258 = vpop.f32.mrb[0].mxu0
    %259 = vmatprep.mubr.f32.mxu0 0.0
    %260 = vmatmul.mubr.f32.gmra.mrb[0].mxu0 %v128
    %v261 = vpop.f32.mrb[0].mxu0
    %v262 = vadd.f32 0.0, %v261
    %v263 = vpop.f32.mrb[0].mxu0
    %264 = vmatprep.mubr.f32.mxu0 0.0
    %265 = vmatmul.mubr.f32.gmra.mrb[0].mxu0 %v131
    %v266 = vpop.f32.mrb[0].mxu0
    %v267 = vadd.f32 0.0, %v266
    %v268 = vpop.f32.mrb[0].mxu0
    %269 = vmatprep.mubr.f32.mxu0 0.0
    %270 = vmatmul.mubr.f32.gmra.mrb[0].mxu0 %v134
    %v271 = vpop.f32.mrb[0].mxu0
    %v272 = vadd.f32 0.0, %v271
    %v273 = vpop.f32.mrb[0].mxu0
    %274 = vmatprep.mubr.f32.mxu0 0.0
    %275 = vmatmul.mubr.f32.gmra.mrb[0].mxu0 %v137
    %v276 = vpop.f32.mrb[0].mxu0
    %v277 = vadd.f32 0.0, %v276
    %v278 = vpop.f32.mrb[0].mxu0
    %279 = vmatprep.mubr.f32.mxu0 0.0
    %280 = vmatmul.mubr.f32.gmra.mrb[0].mxu0 %v140
    %v281 = vpop.f32.mrb[0].mxu0
    %v282 = vadd.f32 0.0, %v281
    %v283 = vpop.f32.mrb[0].mxu0
    %284 = vmatprep.mubr.f32.mxu0 0.0
    %285 = vmatmul.mubr.f32.gmra.mrb[0].mxu0 %v143
    %v286 = vpop.f32.mrb[0].mxu0
    %v287 = vadd.f32 0.0, %v286
    %v288 = vpop.f32.mrb[0].mxu0
    %289 = vmatprep.mubr.f32.mxu0 0.0
    %290 = vmatmul.mubr.f32.gmra.mrb[0].mxu0 %v146
    %v291 = vpop.f32.mrb[0].mxu0
    %v292 = vadd.f32 0.0, %v291
    %v293 = vpop.f32.mrb[0].mxu0
    %294 = vmatprep.mubr.f32.mxu0 0.0
    %295 = vmatmul.mubr.f32.gmra.mrb[0].mxu0 %v149
    %v296 = vpop.f32.mrb[0].mxu0
    %v297 = vadd.f32 0.0, %v296
    %v298 = vpop.f32.mrb[0].mxu0
    %299 = vdwg.mxu0
    %v300 = vadd.f32 %v81, %v222
    %v301 = vadd.f32 %v82, %v227
    %v302 = vadd.f32 %v83, %v232
    %v303 = vadd.f32 %v84, %v237
    %v304 = vadd.f32 %v85, %v242
    %v305 = vadd.f32 %v86, %v247
    %v306 = vadd.f32 %v87, %v252
    %v307 = vadd.f32 %v88, %v257
    %v308 = vadd.f32 %v89, %v262
    %v309 = vadd.f32 %v90, %v267
    %v310 = vadd.f32 %v91, %v272
    %v311 = vadd.f32 %v92, %v277
    %v312 = vadd.f32 %v93, %v282
    %v313 = vadd.f32 %v94, %v287
    %v314 = vadd.f32 %v95, %v292
    %v315 = vadd.f32 %v96, %v297
    %vm316 = vcmask 64512
    %317 = vst.msk [vmem:[#allocation7] sm:$0xff] %vm316, %v300
    %318 = vst.msk [vmem:[#allocation7 + $0x8] sm:$0xff] %vm316, %v301
    %319 = vst.msk [vmem:[#allocation7 + $0x10] sm:$0xff] %vm316, %v302
    %320 = vst.msk [vmem:[#allocation7 + $0x18] sm:$0xff] %vm316, %v303
    %321 = vst.msk [vmem:[#allocation7 + $0x20] sm:$0xff] %vm316, %v304
    %322 = vst.msk [vmem:[#allocation7 + $0x28] sm:$0xff] %vm316, %v305
    %323 = vst.msk [vmem:[#allocation7 + $0x30] sm:$0xff] %vm316, %v306
    %324 = vst.msk [vmem:[#allocation7 + $0x38] sm:$0xff] %vm316, %v307
    %325 = vst.msk [vmem:[#allocation7 + $0x40] sm:$0xff] %vm316, %v308
    %326 = vst.msk [vmem:[#allocation7 + $0x48] sm:$0xff] %vm316, %v309
    %327 = vst.msk [vmem:[#allocation7 + $0x50] sm:$0xff] %vm316, %v310
    %328 = vst.msk [vmem:[#allocation7 + $0x58] sm:$0xff] %vm316, %v311
    %329 = vst.msk [vmem:[#allocation7 + $0x60] sm:$0xff] %vm316, %v312
    %330 = vst.msk [vmem:[#allocation7 + $0x68] sm:$0xff] %vm316, %v313
    %331 = vst.msk [vmem:[#allocation7 + $0x70] sm:$0xff] %vm316, %v314
    %332 = vst.msk [vmem:[#allocation7 + $0x78] sm:$0xff] %vm316, %v315
    // Predicated region
    $region22: #{residual_forward_pallas.3} parent=1 // pred_check
      %p333 = pneg %p60
    $region23: #{residual_forward_pallas.3} parent=1 // pred_check_branch
      %335 = sbr.rel (%p333) target = $region25
    $region24: #{residual_forward_pallas.3} parent=1 // pred_region
      %v336 = vld [vmem:[#allocation7] sm:$0xff]
      %v337 = vld [vmem:[#allocation7 + $0x8] sm:$0xff]
      %v338 = vld [vmem:[#allocation7 + $0x10] sm:$0xff]
      %v339 = vld [vmem:[#allocation7 + $0x18] sm:$0xff]
      %v340 = vld [vmem:[#allocation7 + $0x20] sm:$0xff]
      %v341 = vld [vmem:[#allocation7 + $0x28] sm:$0xff]
      %v342 = vld [vmem:[#allocation7 + $0x30] sm:$0xff]
      %v343 = vld [vmem:[#allocation7 + $0x38] sm:$0xff]
      %v344 = vld [vmem:[#allocation7 + $0x40] sm:$0xff]
      %v345 = vld [vmem:[#allocation7 + $0x48] sm:$0xff]
      %v346 = vld [vmem:[#allocation7 + $0x50] sm:$0xff]
      %v347 = vld [vmem:[#allocation7 + $0x58] sm:$0xff]
      %v348 = vld [vmem:[#allocation7 + $0x60] sm:$0xff]
      %v349 = vld [vmem:[#allocation7 + $0x68] sm:$0xff]
      %v350 = vld [vmem:[#allocation7 + $0x70] sm:$0xff]
      %v351 = vld [vmem:[#allocation7 + $0x78] sm:$0xff]
      %v352 = vsel %vm316, %v336, 0.0
      %v353 = vsel %vm316, %v337, 0.0
      %v354 = vadd.f32 %v352, %v353
      %v355 = vsel %vm316, %v338, 0.0
      %v356 = vadd.f32 %v354, %v355
      %v357 = vsel %vm316, %v339, 0.0
      %v358 = vadd.f32 %v356, %v357
      %v359 = vsel %vm316, %v340, 0.0
      %v360 = vadd.f32 %v358, %v359
      %v361 = vsel %vm316, %v341, 0.0
      %v362 = vadd.f32 %v360, %v361
      %v363 = vsel %vm316, %v342, 0.0
      %v364 = vadd.f32 %v362, %v363
      %v365 = vsel %vm316, %v343, 0.0
      %v366 = vadd.f32 %v364, %v365
      %v367 = vsel %vm316, %v344, 0.0
      %v368 = vadd.f32 %v366, %v367
      %v369 = vsel %vm316, %v345, 0.0
      %v370 = vadd.f32 %v368, %v369
      %v371 = vsel %vm316, %v346, 0.0
      %v372 = vadd.f32 %v370, %v371
      %v373 = vsel %vm316, %v347, 0.0
      %v374 = vadd.f32 %v372, %v373
      %v375 = vsel %vm316, %v348, 0.0
      %v376 = vadd.f32 %v374, %v375
      %v377 = vsel %vm316, %v349, 0.0
      %v378 = vadd.f32 %v376, %v377
      %v379 = vsel %vm316, %v350, 0.0
      %v380 = vadd.f32 %v378, %v379
      %v381 = vsel %vm316, %v351, 0.0
      %v382 = vadd.f32 %v380, %v381
      %v383 = vrot.slane %v382, 4
      %v384 = vadd.f32 %v382, %v383
      %v385 = vrot.slane %v384, 2
      %v386 = vadd.f32 %v384, %v385
      %v387 = vrot.slane %v386, 1
      %v388 = vadd.f32 %v386, %v387
      %vm389 = vcmask 57344
      %390 = vst.msk [vmem:[#allocation8] sm:$0x1] %vm389, %v388
      %v391 = vmul.f32 %v336, %v336
      %v392 = vmul.f32 %v337, %v337
      %v393 = vmul.f32 %v338, %v338
      %v394 = vmul.f32 %v339, %v339
      %v395 = vmul.f32 %v340, %v340
      %v396 = vmul.f32 %v341, %v341
      %v397 = vmul.f32 %v342, %v342
      %v398 = vmul.f32 %v343, %v343
      %v399 = vmul.f32 %v344, %v344
      %v400 = vmul.f32 %v345, %v345
      %v401 = vmul.f32 %v346, %v346
      %v402 = vmul.f32 %v347, %v347
      %v403 = vmul.f32 %v348, %v348
      %v404 = vmul.f32 %v349, %v349
      %v405 = vmul.f32 %v350, %v350
      %v406 = vmul.f32 %v351, %v351
      %v407 = vsel %vm316, %v391, 0.0
      %v408 = vsel %vm316, %v392, 0.0
      %v409 = vadd.f32 %v407, %v408
      %v410 = vsel %vm316, %v393, 0.0
      %v411 = vadd.f32 %v409, %v410
      %v412 = vsel %vm316, %v394, 0.0
      %v413 = vadd.f32 %v411, %v412
      %v414 = vsel %vm316, %v395, 0.0
      %v415 = vadd.f32 %v413, %v414
      %v416 = vsel %vm316, %v396, 0.0
      %v417 = vadd.f32 %v415, %v416
      %v418 = vsel %vm316, %v397, 0.0
      %v419 = vadd.f32 %v417, %v418
      %v420 = vsel %vm316, %v398, 0.0
      %v421 = vadd.f32 %v419, %v420
      %v422 = vsel %vm316, %v399, 0.0
      %v423 = vadd.f32 %v421, %v422
      %v424 = vsel %vm316, %v400, 0.0
      %v425 = vadd.f32 %v423, %v424
      %v426 = vsel %vm316, %v401, 0.0
      %v427 = vadd.f32 %v425, %v426
      %v428 = vsel %vm316, %v402, 0.0
      %v429 = vadd.f32 %v427, %v428
      %v430 = vsel %vm316, %v403, 0.0
      %v431 = vadd.f32 %v429, %v430
      %v432 = vsel %vm316, %v404, 0.0
      %v433 = vadd.f32 %v431, %v432
      %v434 = vsel %vm316, %v405, 0.0
      %v435 = vadd.f32 %v433, %v434
      %v436 = vsel %vm316, %v406, 0.0
      %v437 = vadd.f32 %v435, %v436
      %v438 = vrot.slane %v437, 4
      %v439 = vadd.f32 %v437, %v438
      %v440 = vrot.slane %v439, 2
      %v441 = vadd.f32 %v439, %v440
      %v442 = vrot.slane %v441, 1
      %v443 = vadd.f32 %v441, %v442
      %444 = vst.msk [vmem:[#allocation10] sm:$0x1] %vm389, %v443
    $region25: #{residual_forward_pallas.3} parent=1 // pred_fallthru
      _
    // Predicated region
    $region26: #{residual_forward_pallas.3} parent=1 // pred_check
      _
    $region27: #{residual_forward_pallas.3} parent=1 // pred_check_branch
      %446 = sbr.rel (0) target = $region29
    $region28: #{residual_forward_pallas.3} parent=1 // pred_region
      %s448 = ssub.s32 2048, 2048
      %449 = vsyncadd [#allocation4], %s448
      %s450 = sshll.u32 [#allocation7], 4
      %s451 = int_to_ptr.vmem [resolvable:$true] %s450
      %456 = dma.vmem_to_hbm [thread:$0]  %s451, 2048, %s2, [#allocation4], 128, 128, 8
    $region29: #{residual_forward_pallas.3} parent=1 // pred_fallthru
      _
    // Predicated region
    $region30: #{residual_forward_pallas.3} parent=1 // pred_check
      _
    $region31: #{residual_forward_pallas.3} parent=1 // pred_check_branch
      %458 = sbr.rel (0) target = $region33
    $region32: #{residual_forward_pallas.3} parent=1 // pred_region
      %s460 = ssub.s32 16, 16
      %461 = vsyncadd [#allocation9], %s460
      %s463 = sshll.u32 [#allocation8], 4
      %s464 = int_to_ptr.vmem [resolvable:$true] %s463
      %466 = dma.vmem_to_hbm [thread:$0]  %s464, 16, %s3, [#allocation9]
    $region33: #{residual_forward_pallas.3} parent=1 // pred_fallthru
      _
    // Predicated region
    $region34: #{residual_forward_pallas.3} parent=1 // pred_check
      _
    $region35: #{residual_forward_pallas.3} parent=1 // pred_check_branch
      %468 = sbr.rel (0) target = $region37
    $region36: #{residual_forward_pallas.3} parent=1 // pred_region
      %s470 = ssub.s32 16, 16
      %471 = vsyncadd [#allocation9], %s470
      %s473 = sshll.u32 [#allocation10], 4
      %s474 = int_to_ptr.vmem [resolvable:$true] %s473
      %476 = dma.vmem_to_hbm [thread:$0]  %s474, 16, %s4, [#allocation9]
    $region37: #{residual_forward_pallas.3} parent=1 // pred_fallthru
      _
    // Predicated region
    $region38: #{residual_forward_pallas.3} parent=1 // pred_check
      _
    $region39: #{residual_forward_pallas.3} parent=1 // pred_check_branch
      %478 = sbr.rel (0) target = $region41
    $region40: #{residual_forward_pallas.3} parent=1 // pred_region
      %479 = dma.done [#allocation4], 2048
    $region41: #{residual_forward_pallas.3} parent=1 // pred_fallthru
      _
    // Predicated region
    $region42: #{residual_forward_pallas.3} parent=1 // pred_check
      _
    $region43: #{residual_forward_pallas.3} parent=1 // pred_check_branch
      %481 = sbr.rel (0) target = $region45
    $region44: #{residual_forward_pallas.3} parent=1 // pred_region
      %482 = dma.done [#allocation9], 16
    $region45: #{residual_forward_pallas.3} parent=1 // pred_fallthru
      _
    // Predicated region
    $region46: #{residual_forward_pallas.3} parent=1 // pred_check
      _
    $region47: #{residual_forward_pallas.3} parent=1 // pred_check_branch
      %484 = sbr.rel (0) target = $region49
    $region48: #{residual_forward_pallas.3} parent=1 // pred_region
      %485 = dma.done [#allocation9], 16
    $region49: #{residual_forward_pallas.3} parent=1 // pred_fallthru
      _
    %486 = vsyncpa [#allocation3], 1
    %487 = vsyncpa [#allocation6], 1
    %488 = vsyncpa [#allocation4], 1
    %489 = vsyncpa [#allocation9], 1

// kernel: residual_forward_pallas.4
$region0: #{residual_forward_pallas.4}
  #allocation0 [shape = 'u32[]', space=smem, size = 0x4, offset = 0x4, fixed_abs, tag = 'smem constant byte address 0x4 - core index']
  #allocation1 [shape = 'u32[144,128]{1,0:T(1,128)}', space=vmem, size = 0x12000, scoped, tag = 'internal scratch']
  %s0 = inlined_call_operand.hbm [shape: f32[128,72], index: 0, kind: input, shape index: {}]
  %s1 = inlined_call_operand.hbm [shape: f32[72,8], index: 1, kind: input, shape index: {}]
  %s2 = inlined_call_operand.hbm [shape: f32[1,72], index: 2, kind: input, shape index: {}]
  %s3 = inlined_call_operand.hbm [shape: f32[1,72], index: 3, kind: input, shape index: {}]
  %s4 = inlined_call_operand.hbm [shape: f32[128,8], index: 4, kind: output, shape index: {0}]
  %s5 = inlined_call_operand.hbm [shape: f32[1,1,8], index: 5, kind: output, shape index: {1}]
  %s6 = inlined_call_operand.hbm [shape: f32[1,1,8], index: 6, kind: output, shape index: {2}]
  %7 = xla_tuple %s4, %s5, %s6
  %s8 = sld [smem:[#allocation0]]
  $region66: #{residual_forward_pallas.4} parent=0
    _
  %s10 = ssub.s32 1, %s8
  %s11 = scalar_select 0, %s10, %s8
  $region1: #{residual_forward_pallas.4} parent=0
    #allocation2 [shape = 'u8[65536]{0}', space=vmem, size = 0x10000, scoped, tag = 'input window, operand 0, single buffered']
    #allocation3 [shape = 's32[1]{0}', space=sflag, size = 0x4, scoped, tag = 'scoped memory for residual_forward_pallas.4']
    #allocation4 [shape = 's32[1]{0}', space=sflag, size = 0x4, scoped, tag = 'scoped memory for residual_forward_pallas.4']
    #allocation5 [shape = 'u8[36864]{0}', space=vmem, size = 0x9000, scoped, tag = 'input window, operand 1, single buffered']
    #allocation6 [shape = 's32[1]{0}', space=sflag, size = 0x4, scoped, tag = 'scoped memory for residual_forward_pallas.4']
    #allocation7 [shape = 'u8[512]{0}', space=vmem, size = 0x400, scoped, tag = 'input window, operand 2, single buffered']
    #allocation8 [shape = 'u8[512]{0}', space=vmem, size = 0x400, scoped, tag = 'input window, operand 3, single buffered']
    #allocation9 [shape = 's32[1]{0}', space=sflag, size = 0x4, scoped, tag = 'scoped memory for residual_forward_pallas.4']
    #allocation10 [shape = 'u8[65536]{0}', space=vmem, size = 0x10000, scoped, tag = 'output window, operand 0, single buffered']
    #allocation11 [shape = 'u8[512]{0}', space=vmem, size = 0x400, scoped, tag = 'output window, operand 1, single buffered']
    #allocation12 [shape = 's32[1]{0}', space=sflag, size = 0x4, scoped, tag = 'scoped memory for residual_forward_pallas.4']
    #allocation13 [shape = 'u8[512]{0}', space=vmem, size = 0x400, scoped, tag = 'output window, operand 2, single buffered']
    %12 = vsyncpa [#allocation3], 0
    %13 = vsyncpa [#allocation6], 0
    %14 = vsyncpa [#allocation9], 0
    %15 = vsyncpa [#allocation4], 0
    %16 = vsyncpa [#allocation12], 0
    // Predicated region
    $region2: #{residual_forward_pallas.4} parent=1 // pred_check
      _
    $region3: #{residual_forward_pallas.4} parent=1 // pred_check_branch
      %18 = sbr.rel (0) target = $region5
    $region4: #{residual_forward_pallas.4} parent=1 // pred_region
      %s20 = ssub.s32 2048, 2048
      %21 = vsyncadd [#allocation3], %s20
      %s22 = sshll.u32 [#allocation2], 4
      %s23 = int_to_ptr.vmem [resolvable:$true] %s22
      %28 = dma.hbm_to_vmem [thread:$0]  %s0, 2048, %s23, [#allocation3], 128, 128, 8
    $region5: #{residual_forward_pallas.4} parent=1 // pred_fallthru
      _
    // Predicated region
    $region6: #{residual_forward_pallas.4} parent=1 // pred_check
      _
    $region7: #{residual_forward_pallas.4} parent=1 // pred_check_branch
      %30 = sbr.rel (0) target = $region9
    $region8: #{residual_forward_pallas.4} parent=1 // pred_region
      %s32 = ssub.s32 1152, 1152
      %33 = vsyncadd [#allocation6], %s32
      %s34 = sshll.u32 [#allocation5], 4
      %s35 = int_to_ptr.vmem [resolvable:$true] %s34
      %40 = dma.hbm_to_vmem [thread:$0]  %s1, 1152, %s35, [#allocation6], 128, 128, 8
    $region9: #{residual_forward_pallas.4} parent=1 // pred_fallthru
      _
    // Predicated region
    $region10: #{residual_forward_pallas.4} parent=1 // pred_check
      _
    $region11: #{residual_forward_pallas.4} parent=1 // pred_check_branch
      %42 = sbr.rel (0) target = $region13
    $region12: #{residual_forward_pallas.4} parent=1 // pred_region
      %s44 = ssub.s32 16, 16
      %45 = vsyncadd [#allocation6], %s44
      %s47 = sshll.u32 [#allocation7], 4
      %s48 = int_to_ptr.vmem [resolvable:$true] %s47
      %50 = dma.hbm_to_vmem [thread:$0]  %s2, 16, %s48, [#allocation6]
    $region13: #{residual_forward_pallas.4} parent=1 // pred_fallthru
      _
    // Predicated region
    $region14: #{residual_forward_pallas.4} parent=1 // pred_check
      _
    $region15: #{residual_forward_pallas.4} parent=1 // pred_check_branch
      %52 = sbr.rel (0) target = $region17
    $region16: #{residual_forward_pallas.4} parent=1 // pred_region
      %s54 = ssub.s32 16, 16
      %55 = vsyncadd [#allocation9], %s54
      %s57 = sshll.u32 [#allocation8], 4
      %s58 = int_to_ptr.vmem [resolvable:$true] %s57
      %60 = dma.hbm_to_vmem [thread:$0]  %s3, 16, %s58, [#allocation9]
    $region17: #{residual_forward_pallas.4} parent=1 // pred_fallthru
      _
    // Predicated region
    $region18: #{residual_forward_pallas.4} parent=1 // pred_check
      _
    $region19: #{residual_forward_pallas.4} parent=1 // pred_check_branch
      %62 = sbr.rel (0) target = $region21
    $region20: #{residual_forward_pallas.4} parent=1 // pred_region
      %63 = dma.done [#allocation3], 2048
    $region21: #{residual_forward_pallas.4} parent=1 // pred_fallthru
      _
    // Predicated region
    $region22: #{residual_forward_pallas.4} parent=1 // pred_check
      _
    $region23: #{residual_forward_pallas.4} parent=1 // pred_check_branch
      %65 = sbr.rel (0) target = $region25
    $region24: #{residual_forward_pallas.4} parent=1 // pred_region
      %66 = dma.done [#allocation6], 1152
    $region25: #{residual_forward_pallas.4} parent=1 // pred_fallthru
      _
    // Predicated region
    $region26: #{residual_forward_pallas.4} parent=1 // pred_check
      _
    $region27: #{residual_forward_pallas.4} parent=1 // pred_check_branch
      %68 = sbr.rel (0) target = $region29
    $region28: #{residual_forward_pallas.4} parent=1 // pred_region
      %69 = dma.done [#allocation6], 16
    $region29: #{residual_forward_pallas.4} parent=1 // pred_fallthru
      _
    // Predicated region
    $region30: #{residual_forward_pallas.4} parent=1 // pred_check
      _
    $region31: #{residual_forward_pallas.4} parent=1 // pred_check_branch
      %71 = sbr.rel (0) target = $region33
    $region32: #{residual_forward_pallas.4} parent=1 // pred_region
      %72 = dma.done [#allocation9], 16
    $region33: #{residual_forward_pallas.4} parent=1 // pred_fallthru
      _
    %v73 = vld [vmem:[#allocation2] sm:$0xff]
    %v74 = vld [vmem:[#allocation2 + $0x8] sm:$0xff]
    %v75 = vld [vmem:[#allocation2 + $0x10] sm:$0xff]
    %v76 = vld [vmem:[#allocation2 + $0x18] sm:$0xff]
    %v77 = vld [vmem:[#allocation2 + $0x20] sm:$0xff]
    %v78 = vld [vmem:[#allocation2 + $0x28] sm:$0xff]
    %v79 = vld [vmem:[#allocation2 + $0x30] sm:$0xff]
    %v80 = vld [vmem:[#allocation2 + $0x38] sm:$0xff]
    %v81 = vld [vmem:[#allocation2 + $0x40] sm:$0xff]
    %v82 = vld [vmem:[#allocation2 + $0x48] sm:$0xff]
    %v83 = vld [vmem:[#allocation2 + $0x50] sm:$0xff]
    %v84 = vld [vmem:[#allocation2 + $0x58] sm:$0xff]
    %v85 = vld [vmem:[#allocation2 + $0x60] sm:$0xff]
    %v86 = vld [vmem:[#allocation2 + $0x68] sm:$0xff]
    %v87 = vld [vmem:[#allocation2 + $0x70] sm:$0xff]
    %v88 = vld [vmem:[#allocation2 + $0x78] sm:$0xff]
    %v89 = vld [vmem:[#allocation7] sm:$0x1]
    %v91 = vlaneseq
    %v92 = vshrl.u32 %v91, 7
    %v93 = vsub.s32 0, %v92
    %v94 = vrot.slane %v89, %v93
    %v96 = vmul.f32 %v73, %v94
    %v97 = vmul.f32 %v74, %v94
    %v98 = vmul.f32 %v75, %v94
    %v99 = vmul.f32 %v76, %v94
    %v100 = vmul.f32 %v77, %v94
    %v101 = vmul.f32 %v78, %v94
    %v102 = vmul.f32 %v79, %v94
    %v103 = vmul.f32 %v80, %v94
    %v104 = vmul.f32 %v81, %v94
    %v105 = vmul.f32 %v82, %v94
    %v106 = vmul.f32 %v83, %v94
    %v107 = vmul.f32 %v84, %v94
    %v108 = vmul.f32 %v85, %v94
    %v109 = vmul.f32 %v86, %v94
    %v110 = vmul.f32 %v87, %v94
    %v111 = vmul.f32 %v88, %v94
    %v112 = vld [vmem:[#allocation8] sm:$0x1]
    %v114 = vlaneseq
    %v115 = vshrl.u32 %v114, 7
    %v116 = vsub.s32 0, %v115
    %v117 = vrot.slane %v112, %v116
    %v119 = vadd.f32 %v96, %v117
    %v120 = vadd.f32 %v97, %v117
    %v121 = vadd.f32 %v98, %v117
    %v122 = vadd.f32 %v99, %v117
    %v123 = vadd.f32 %v100, %v117
    %v124 = vadd.f32 %v101, %v117
    %v125 = vadd.f32 %v102, %v117
    %v126 = vadd.f32 %v103, %v117
    %v127 = vadd.f32 %v104, %v117
    %v128 = vadd.f32 %v105, %v117
    %v129 = vadd.f32 %v106, %v117
    %v130 = vadd.f32 %v107, %v117
    %v131 = vadd.f32 %v108, %v117
    %v132 = vadd.f32 %v109, %v117
    %v133 = vadd.f32 %v110, %v117
    %v134 = vadd.f32 %v111, %v117
    %v135 = vmax.f32 %v119, 0.0
    %v136 = vmax.f32 %v120, 0.0
    %v137 = vmax.f32 %v121, 0.0
    %v138 = vmax.f32 %v122, 0.0
    %v139 = vmax.f32 %v123, 0.0
    %v140 = vmax.f32 %v124, 0.0
    %v141 = vmax.f32 %v125, 0.0
    %v142 = vmax.f32 %v126, 0.0
    %v143 = vmax.f32 %v127, 0.0
    %v144 = vmax.f32 %v128, 0.0
    %v145 = vmax.f32 %v129, 0.0
    %v146 = vmax.f32 %v130, 0.0
    %v147 = vmax.f32 %v131, 0.0
    %v148 = vmax.f32 %v132, 0.0
    %v149 = vmax.f32 %v133, 0.0
    %v150 = vmax.f32 %v134, 0.0
    %p151 = scmp.eq.s32.totalorder 0, 0
    // Predicated region
    $region34: #{residual_forward_pallas.4} parent=1 // pred_check
      %p152 = pneg %p151
    $region35: #{residual_forward_pallas.4} parent=1 // pred_check_branch
      %154 = sbr.rel (%p152) target = $region37
    $region36: #{residual_forward_pallas.4} parent=1 // pred_region
      %vm155 = vcmask 64512
      %156 = vst.msk [vmem:[#allocation10] sm:$0xff] %vm155, 0.0
      %157 = vst.msk [vmem:[#allocation10 + $0x8] sm:$0xff] %vm155, 0.0
      %158 = vst.msk [vmem:[#allocation10 + $0x10] sm:$0xff] %vm155, 0.0
      %159 = vst.msk [vmem:[#allocation10 + $0x18] sm:$0xff] %vm155, 0.0
      %160 = vst.msk [vmem:[#allocation10 + $0x20] sm:$0xff] %vm155, 0.0
      %161 = vst.msk [vmem:[#allocation10 + $0x28] sm:$0xff] %vm155, 0.0
      %162 = vst.msk [vmem:[#allocation10 + $0x30] sm:$0xff] %vm155, 0.0
      %163 = vst.msk [vmem:[#allocation10 + $0x38] sm:$0xff] %vm155, 0.0
      %164 = vst.msk [vmem:[#allocation10 + $0x40] sm:$0xff] %vm155, 0.0
      %165 = vst.msk [vmem:[#allocation10 + $0x48] sm:$0xff] %vm155, 0.0
      %166 = vst.msk [vmem:[#allocation10 + $0x50] sm:$0xff] %vm155, 0.0
      %167 = vst.msk [vmem:[#allocation10 + $0x58] sm:$0xff] %vm155, 0.0
      %168 = vst.msk [vmem:[#allocation10 + $0x60] sm:$0xff] %vm155, 0.0
      %169 = vst.msk [vmem:[#allocation10 + $0x68] sm:$0xff] %vm155, 0.0
      %170 = vst.msk [vmem:[#allocation10 + $0x70] sm:$0xff] %vm155, 0.0
      %171 = vst.msk [vmem:[#allocation10 + $0x78] sm:$0xff] %vm155, 0.0
    $region37: #{residual_forward_pallas.4} parent=1 // pred_fallthru
      _
    %v172 = vld [vmem:[#allocation10] sm:$0xff]
    %v173 = vld [vmem:[#allocation10 + $0x8] sm:$0xff]
    %v174 = vld [vmem:[#allocation10 + $0x10] sm:$0xff]
    %v175 = vld [vmem:[#allocation10 + $0x18] sm:$0xff]
    %v176 = vld [vmem:[#allocation10 + $0x20] sm:$0xff]
    %v177 = vld [vmem:[#allocation10 + $0x28] sm:$0xff]
    %v178 = vld [vmem:[#allocation10 + $0x30] sm:$0xff]
    %v179 = vld [vmem:[#allocation10 + $0x38] sm:$0xff]
    %v180 = vld [vmem:[#allocation10 + $0x40] sm:$0xff]
    %v181 = vld [vmem:[#allocation10 + $0x48] sm:$0xff]
    %v182 = vld [vmem:[#allocation10 + $0x50] sm:$0xff]
    %v183 = vld [vmem:[#allocation10 + $0x58] sm:$0xff]
    %v184 = vld [vmem:[#allocation10 + $0x60] sm:$0xff]
    %v185 = vld [vmem:[#allocation10 + $0x68] sm:$0xff]
    %v186 = vld [vmem:[#allocation10 + $0x70] sm:$0xff]
    %v187 = vld [vmem:[#allocation10 + $0x78] sm:$0xff]
    %v188 = vld [vmem:[#allocation5] sm:$0xff]
    %v189 = vld [vmem:[#allocation5 + $0x8] sm:$0xff]
    %v190 = vld [vmem:[#allocation5 + $0x10] sm:$0xff]
    %v191 = vld [vmem:[#allocation5 + $0x18] sm:$0xff]
    %v192 = vld [vmem:[#allocation5 + $0x20] sm:$0xff]
    %v193 = vld [vmem:[#allocation5 + $0x28] sm:$0xff]
    %v194 = vld [vmem:[#allocation5 + $0x30] sm:$0xff]
    %v195 = vld [vmem:[#allocation5 + $0x38] sm:$0xff]
    %v196 = vld [vmem:[#allocation5 + $0x40] sm:$0xff]
    %vm197 = vcmask 588800
    %v199 = vsel %vm197, %v135, 0
    %v202 = vsel %vm197, %v136, 0
    %v205 = vsel %vm197, %v137, 0
    %v208 = vsel %vm197, %v138, 0
    %v211 = vsel %vm197, %v139, 0
    %v214 = vsel %vm197, %v140, 0
    %v217 = vsel %vm197, %v141, 0
    %v220 = vsel %vm197, %v142, 0
    %v223 = vsel %vm197, %v143, 0
    %v226 = vsel %vm197, %v144, 0
    %v229 = vsel %vm197, %v145, 0
    %v232 = vsel %vm197, %v146, 0
    %v235 = vsel %vm197, %v147, 0
    %v238 = vsel %vm197, %v148, 0
    %v241 = vsel %vm197, %v149, 0
    %v244 = vsel %vm197, %v150, 0
    %246 = vmatprep.subr.mxu0 0.0
    %247 = vmatpush1.msra.mxu0 %v188
    %248 = vmatprep.subr.mxu0 0.0
    %249 = vmatpush1.msra.mxu0 %v189
    %250 = vmatprep.subr.mxu0 0.0
    %251 = vmatpush1.msra.mxu0 %v190
    %252 = vmatprep.subr.mxu0 0.0
    %253 = vmatpush1.msra.mxu0 %v191
    %254 = vmatprep.subr.mxu0 0.0
    %255 = vmatpush1.msra.mxu0 %v192
    %256 = vmatprep.subr.mxu0 0.0
    %257 = vmatpush1.msra.mxu0 %v193
    %258 = vmatprep.subr.mxu0 0.0
    %259 = vmatpush1.msra.mxu0 %v194
    %260 = vmatprep.subr.mxu0 0.0
    %261 = vmatpush1.msra.mxu0 %v195
    %262 = vmatprep.subr.mxu0 0.0
    %263 = vmatpush1.msra.mxu0 %v196
    %264 = vmatprep.subr.mxu0 0.0
    %265 = vmatpush1.msra.mxu0 0.0
    %266 = vmatprep.subr.mxu0 0.0
    %267 = vmatpush1.msra.mxu0 0.0
    %268 = vmatprep.subr.mxu0 0.0
    %269 = vmatpush1.msra.mxu0 0.0
    %270 = vmatprep.subr.mxu0 0.0
    %271 = vmatpush1.msra.mxu0 0.0
    %272 = vmatprep.subr.mxu0 0.0
    %273 = vmatpush1.msra.mxu0 0.0
    %274 = vmatprep.subr.mxu0 0.0
    %275 = vmatpush1.msra.mxu0 0.0
    %276 = vmatprep.subr.mxu0 0.0
    %277 = vmatpush1.msra.mxu0 0.0
    %278 = vmatprep.subr.mxu0 0.0
    %279 = vmatpush1.msra.mxu0 0.0
    %280 = vmatprep.subr.mxu0 0.0
    %281 = vmatpush1.msra.mxu0 0.0
    %282 = vmatprep.subr.mxu0 0.0
    %283 = vmatpush1.msra.mxu0 0.0
    %284 = vmatprep.subr.mxu0 0.0
    %285 = vmatpush1.msra.mxu0 0.0
    %286 = vmatprep.subr.mxu0 0.0
    %287 = vmatpush1.msra.mxu0 0.0
    %288 = vmatprep.subr.mxu0 0.0
    %289 = vmatpush1.msra.mxu0 0.0
    %290 = vmatprep.subr.mxu0 0.0
    %291 = vmatpush1.msra.mxu0 0.0
    %292 = vmatprep.subr.mxu0 0.0
    %293 = vmatpush1.msra.mxu0 0.0
    %294 = vmatprep.subr.mxu0 0.0
    %295 = vmatpush1.msra.mxu0 0.0
    %296 = vmatprep.subr.mxu0 0.0
    %297 = vmatpush1.msra.mxu0 0.0
    %298 = vmatprep.subr.mxu0 0.0
    %299 = vmatpush1.msra.mxu0 0.0
    %300 = vmatprep.subr.mxu0 0.0
    %301 = vmatpush1.msra.mxu0 0.0
    %302 = vmatprep.subr.mxu0 0.0
    %303 = vmatpush1.msra.mxu0 0.0
    %304 = vmatprep.subr.mxu0 0.0
    %305 = vmatpush1.msra.mxu0 0.0
    %306 = vmatprep.subr.mxu0 0.0
    %307 = vmatpush1.msra.mxu0 0.0
    %308 = vmatprep.subr.mxu0 0.0
    %309 = vmatpush1.msra.mxu0 0.0
    %310 = vmatprep.mubr.f32.mxu0 0.0
    %311 = vmatmul.mubr.f32.gmra.mrb[0].mxu0 %v199
    %v312 = vpop.f32.mrb[0].mxu0
    %v313 = vadd.f32 0.0, %v312
    %v314 = vpop.f32.mrb[0].mxu0
    %315 = vmatprep.mubr.f32.mxu0 0.0
    %316 = vmatmul.mubr.f32.gmra.mrb[0].mxu0 %v202
    %v317 = vpop.f32.mrb[0].mxu0
    %v318 = vadd.f32 0.0, %v317
    %v319 = vpop.f32.mrb[0].mxu0
    %320 = vmatprep.mubr.f32.mxu0 0.0
    %321 = vmatmul.mubr.f32.gmra.mrb[0].mxu0 %v205
    %v322 = vpop.f32.mrb[0].mxu0
    %v323 = vadd.f32 0.0, %v322
    %v324 = vpop.f32.mrb[0].mxu0
    %325 = vmatprep.mubr.f32.mxu0 0.0
    %326 = vmatmul.mubr.f32.gmra.mrb[0].mxu0 %v208
    %v327 = vpop.f32.mrb[0].mxu0
    %v328 = vadd.f32 0.0, %v327
    %v329 = vpop.f32.mrb[0].mxu0
    %330 = vmatprep.mubr.f32.mxu0 0.0
    %331 = vmatmul.mubr.f32.gmra.mrb[0].mxu0 %v211
    %v332 = vpop.f32.mrb[0].mxu0
    %v333 = vadd.f32 0.0, %v332
    %v334 = vpop.f32.mrb[0].mxu0
    %335 = vmatprep.mubr.f32.mxu0 0.0
    %336 = vmatmul.mubr.f32.gmra.mrb[0].mxu0 %v214
    %v337 = vpop.f32.mrb[0].mxu0
    %v338 = vadd.f32 0.0, %v337
    %v339 = vpop.f32.mrb[0].mxu0
    %340 = vmatprep.mubr.f32.mxu0 0.0
    %341 = vmatmul.mubr.f32.gmra.mrb[0].mxu0 %v217
    %v342 = vpop.f32.mrb[0].mxu0
    %v343 = vadd.f32 0.0, %v342
    %v344 = vpop.f32.mrb[0].mxu0
    %345 = vmatprep.mubr.f32.mxu0 0.0
    %346 = vmatmul.mubr.f32.gmra.mrb[0].mxu0 %v220
    %v347 = vpop.f32.mrb[0].mxu0
    %v348 = vadd.f32 0.0, %v347
    %v349 = vpop.f32.mrb[0].mxu0
    %350 = vmatprep.mubr.f32.mxu0 0.0
    %351 = vmatmul.mubr.f32.gmra.mrb[0].mxu0 %v223
    %v352 = vpop.f32.mrb[0].mxu0
    %v353 = vadd.f32 0.0, %v352
    %v354 = vpop.f32.mrb[0].mxu0
    %355 = vmatprep.mubr.f32.mxu0 0.0
    %356 = vmatmul.mubr.f32.gmra.mrb[0].mxu0 %v226
    %v357 = vpop.f32.mrb[0].mxu0
    %v358 = vadd.f32 0.0, %v357
    %v359 = vpop.f32.mrb[0].mxu0
    %360 = vmatprep.mubr.f32.mxu0 0.0
    %361 = vmatmul.mubr.f32.gmra.mrb[0].mxu0 %v229
    %v362 = vpop.f32.mrb[0].mxu0
    %v363 = vadd.f32 0.0, %v362
    %v364 = vpop.f32.mrb[0].mxu0
    %365 = vmatprep.mubr.f32.mxu0 0.0
    %366 = vmatmul.mubr.f32.gmra.mrb[0].mxu0 %v232
    %v367 = vpop.f32.mrb[0].mxu0
    %v368 = vadd.f32 0.0, %v367
    %v369 = vpop.f32.mrb[0].mxu0
    %370 = vmatprep.mubr.f32.mxu0 0.0
    %371 = vmatmul.mubr.f32.gmra.mrb[0].mxu0 %v235
    %v372 = vpop.f32.mrb[0].mxu0
    %v373 = vadd.f32 0.0, %v372
    %v374 = vpop.f32.mrb[0].mxu0
    %375 = vmatprep.mubr.f32.mxu0 0.0
    %376 = vmatmul.mubr.f32.gmra.mrb[0].mxu0 %v238
    %v377 = vpop.f32.mrb[0].mxu0
    %v378 = vadd.f32 0.0, %v377
    %v379 = vpop.f32.mrb[0].mxu0
    %380 = vmatprep.mubr.f32.mxu0 0.0
    %381 = vmatmul.mubr.f32.gmra.mrb[0].mxu0 %v241
    %v382 = vpop.f32.mrb[0].mxu0
    %v383 = vadd.f32 0.0, %v382
    %v384 = vpop.f32.mrb[0].mxu0
    %385 = vmatprep.mubr.f32.mxu0 0.0
    %386 = vmatmul.mubr.f32.gmra.mrb[0].mxu0 %v244
    %v387 = vpop.f32.mrb[0].mxu0
    %v388 = vadd.f32 0.0, %v387
    %v389 = vpop.f32.mrb[0].mxu0
    %390 = vdwg.mxu0
    %v391 = vadd.f32 %v172, %v313
    %v392 = vadd.f32 %v173, %v318
    %v393 = vadd.f32 %v174, %v323
    %v394 = vadd.f32 %v175, %v328
    %v395 = vadd.f32 %v176, %v333
    %v396 = vadd.f32 %v177, %v338
    %v397 = vadd.f32 %v178, %v343
    %v398 = vadd.f32 %v179, %v348
    %v399 = vadd.f32 %v180, %v353
    %v400 = vadd.f32 %v181, %v358
    %v401 = vadd.f32 %v182, %v363
    %v402 = vadd.f32 %v183, %v368
    %v403 = vadd.f32 %v184, %v373
    %v404 = vadd.f32 %v185, %v378
    %v405 = vadd.f32 %v186, %v383
    %v406 = vadd.f32 %v187, %v388
    %vm407 = vcmask 64512
    %408 = vst.msk [vmem:[#allocation10] sm:$0xff] %vm407, %v391
    %409 = vst.msk [vmem:[#allocation10 + $0x8] sm:$0xff] %vm407, %v392
    %410 = vst.msk [vmem:[#allocation10 + $0x10] sm:$0xff] %vm407, %v393
    %411 = vst.msk [vmem:[#allocation10 + $0x18] sm:$0xff] %vm407, %v394
    %412 = vst.msk [vmem:[#allocation10 + $0x20] sm:$0xff] %vm407, %v395
    %413 = vst.msk [vmem:[#allocation10 + $0x28] sm:$0xff] %vm407, %v396
    %414 = vst.msk [vmem:[#allocation10 + $0x30] sm:$0xff] %vm407, %v397
    %415 = vst.msk [vmem:[#allocation10 + $0x38] sm:$0xff] %vm407, %v398
    %416 = vst.msk [vmem:[#allocation10 + $0x40] sm:$0xff] %vm407, %v399
    %417 = vst.msk [vmem:[#allocation10 + $0x48] sm:$0xff] %vm407, %v400
    %418 = vst.msk [vmem:[#allocation10 + $0x50] sm:$0xff] %vm407, %v401
    %419 = vst.msk [vmem:[#allocation10 + $0x58] sm:$0xff] %vm407, %v402
    %420 = vst.msk [vmem:[#allocation10 + $0x60] sm:$0xff] %vm407, %v403
    %421 = vst.msk [vmem:[#allocation10 + $0x68] sm:$0xff] %vm407, %v404
    %422 = vst.msk [vmem:[#allocation10 + $0x70] sm:$0xff] %vm407, %v405
    %423 = vst.msk [vmem:[#allocation10 + $0x78] sm:$0xff] %vm407, %v406
    // Predicated region
    $region38: #{residual_forward_pallas.4} parent=1 // pred_check
      %p424 = pneg %p151
    $region39: #{residual_forward_pallas.4} parent=1 // pred_check_branch
      %426 = sbr.rel (%p424) target = $region41
    $region40: #{residual_forward_pallas.4} parent=1 // pred_region
      %v427 = vld [vmem:[#allocation10] sm:$0xff]
      %v428 = vld [vmem:[#allocation10 + $0x8] sm:$0xff]
      %v429 = vld [vmem:[#allocation10 + $0x10] sm:$0xff]
      %v430 = vld [vmem:[#allocation10 + $0x18] sm:$0xff]
      %v431 = vld [vmem:[#allocation10 + $0x20] sm:$0xff]
      %v432 = vld [vmem:[#allocation10 + $0x28] sm:$0xff]
      %v433 = vld [vmem:[#allocation10 + $0x30] sm:$0xff]
      %v434 = vld [vmem:[#allocation10 + $0x38] sm:$0xff]
      %v435 = vld [vmem:[#allocation10 + $0x40] sm:$0xff]
      %v436 = vld [vmem:[#allocation10 + $0x48] sm:$0xff]
      %v437 = vld [vmem:[#allocation10 + $0x50] sm:$0xff]
      %v438 = vld [vmem:[#allocation10 + $0x58] sm:$0xff]
      %v439 = vld [vmem:[#allocation10 + $0x60] sm:$0xff]
      %v440 = vld [vmem:[#allocation10 + $0x68] sm:$0xff]
      %v441 = vld [vmem:[#allocation10 + $0x70] sm:$0xff]
      %v442 = vld [vmem:[#allocation10 + $0x78] sm:$0xff]
      %v443 = vsel %vm407, %v427, 0.0
      %v444 = vsel %vm407, %v428, 0.0
      %v445 = vadd.f32 %v443, %v444
      %v446 = vsel %vm407, %v429, 0.0
      %v447 = vadd.f32 %v445, %v446
      %v448 = vsel %vm407, %v430, 0.0
      %v449 = vadd.f32 %v447, %v448
      %v450 = vsel %vm407, %v431, 0.0
      %v451 = vadd.f32 %v449, %v450
      %v452 = vsel %vm407, %v432, 0.0
      %v453 = vadd.f32 %v451, %v452
      %v454 = vsel %vm407, %v433, 0.0
      %v455 = vadd.f32 %v453, %v454
      %v456 = vsel %vm407, %v434, 0.0
      %v457 = vadd.f32 %v455, %v456
      %v458 = vsel %vm407, %v435, 0.0
      %v459 = vadd.f32 %v457, %v458
      %v460 = vsel %vm407, %v436, 0.0
      %v461 = vadd.f32 %v459, %v460
      %v462 = vsel %vm407, %v437, 0.0
      %v463 = vadd.f32 %v461, %v462
      %v464 = vsel %vm407, %v438, 0.0
      %v465 = vadd.f32 %v463, %v464
      %v466 = vsel %vm407, %v439, 0.0
      %v467 = vadd.f32 %v465, %v466
      %v468 = vsel %vm407, %v440, 0.0
      %v469 = vadd.f32 %v467, %v468
      %v470 = vsel %vm407, %v441, 0.0
      %v471 = vadd.f32 %v469, %v470
      %v472 = vsel %vm407, %v442, 0.0
      %v473 = vadd.f32 %v471, %v472
      %v474 = vrot.slane %v473, 4
      %v475 = vadd.f32 %v473, %v474
      %v476 = vrot.slane %v475, 2
      %v477 = vadd.f32 %v475, %v476
      %v478 = vrot.slane %v477, 1
      %v479 = vadd.f32 %v477, %v478
      %vm480 = vcmask 57344
      %481 = vst.msk [vmem:[#allocation11] sm:$0x1] %vm480, %v479
      %v482 = vmul.f32 %v427, %v427
      %v483 = vmul.f32 %v428, %v428
      %v484 = vmul.f32 %v429, %v429
      %v485 = vmul.f32 %v430, %v430
      %v486 = vmul.f32 %v431, %v431
      %v487 = vmul.f32 %v432, %v432
      %v488 = vmul.f32 %v433, %v433
      %v489 = vmul.f32 %v434, %v434
      %v490 = vmul.f32 %v435, %v435
      %v491 = vmul.f32 %v436, %v436
      %v492 = vmul.f32 %v437, %v437
      %v493 = vmul.f32 %v438, %v438
      %v494 = vmul.f32 %v439, %v439
      %v495 = vmul.f32 %v440, %v440
      %v496 = vmul.f32 %v441, %v441
      %v497 = vmul.f32 %v442, %v442
      %v498 = vsel %vm407, %v482, 0.0
      %v499 = vsel %vm407, %v483, 0.0
      %v500 = vadd.f32 %v498, %v499
      %v501 = vsel %vm407, %v484, 0.0
      %v502 = vadd.f32 %v500, %v501
      %v503 = vsel %vm407, %v485, 0.0
      %v504 = vadd.f32 %v502, %v503
      %v505 = vsel %vm407, %v486, 0.0
      %v506 = vadd.f32 %v504, %v505
      %v507 = vsel %vm407, %v487, 0.0
      %v508 = vadd.f32 %v506, %v507
      %v509 = vsel %vm407, %v488, 0.0
      %v510 = vadd.f32 %v508, %v509
      %v511 = vsel %vm407, %v489, 0.0
      %v512 = vadd.f32 %v510, %v511
      %v513 = vsel %vm407, %v490, 0.0
      %v514 = vadd.f32 %v512, %v513
      %v515 = vsel %vm407, %v491, 0.0
      %v516 = vadd.f32 %v514, %v515
      %v517 = vsel %vm407, %v492, 0.0
      %v518 = vadd.f32 %v516, %v517
      %v519 = vsel %vm407, %v493, 0.0
      %v520 = vadd.f32 %v518, %v519
      %v521 = vsel %vm407, %v494, 0.0
      %v522 = vadd.f32 %v520, %v521
      %v523 = vsel %vm407, %v495, 0.0
      %v524 = vadd.f32 %v522, %v523
      %v525 = vsel %vm407, %v496, 0.0
      %v526 = vadd.f32 %v524, %v525
      %v527 = vsel %vm407, %v497, 0.0
      %v528 = vadd.f32 %v526, %v527
      %v529 = vrot.slane %v528, 4
      %v530 = vadd.f32 %v528, %v529
      %v531 = vrot.slane %v530, 2
      %v532 = vadd.f32 %v530, %v531
      %v533 = vrot.slane %v532, 1
      %v534 = vadd.f32 %v532, %v533
      %535 = vst.msk [vmem:[#allocation13] sm:$0x1] %vm480, %v534
    $region41: #{residual_forward_pallas.4} parent=1 // pred_fallthru
      _
    // Predicated region
    $region42: #{residual_forward_pallas.4} parent=1 // pred_check
      _
    $region43: #{residual_forward_pallas.4} parent=1 // pred_check_branch
      %537 = sbr.rel (0) target = $region45
    $region44: #{residual_forward_pallas.4} parent=1 // pred_region
      %s539 = ssub.s32 2048, 2048
      %540 = vsyncadd [#allocation4], %s539
      %s541 = sshll.u32 [#allocation10], 4
      %s542 = int_to_ptr.vmem [resolvable:$true] %s541
      %547 = dma.vmem_to_hbm [thread:$0]  %s542, 2048, %s4, [#allocation4], 128, 128, 8
    $region45: #{residual_forward_pallas.4} parent=1 // pred_fallthru
      _
    // Predicated region
    $region46: #{residual_forward_pallas.4} parent=1 // pred_check
      _
    $region47: #{residual_forward_pallas.4} parent=1 // pred_check_branch
      %549 = sbr.rel (0) target = $region49
    $region48: #{residual_forward_pallas.4} parent=1 // pred_region
      %s551 = ssub.s32 16, 16
      %552 = vsyncadd [#allocation12], %s551
      %s554 = sshll.u32 [#allocation11], 4
      %s555 = int_to_ptr.vmem [resolvable:$true] %s554
      %557 = dma.vmem_to_hbm [thread:$0]  %s555, 16, %s5, [#allocation12]
    $region49: #{residual_forward_pallas.4} parent=1 // pred_fallthru
      _
    // Predicated region
    $region50: #{residual_forward_pallas.4} parent=1 // pred_check
      _
    $region51: #{residual_forward_pallas.4} parent=1 // pred_check_branch
      %559 = sbr.rel (0) target = $region53
    $region52: #{residual_forward_pallas.4} parent=1 // pred_region
      %s561 = ssub.s32 16, 16
      %562 = vsyncadd [#allocation12], %s561
      %s564 = sshll.u32 [#allocation13], 4
      %s565 = int_to_ptr.vmem [resolvable:$true] %s564
      %567 = dma.vmem_to_hbm [thread:$0]  %s565, 16, %s6, [#allocation12]
    $region53: #{residual_forward_pallas.4} parent=1 // pred_fallthru
      _
    // Predicated region
    $region54: #{residual_forward_pallas.4} parent=1 // pred_check
      _
    $region55: #{residual_forward_pallas.4} parent=1 // pred_check_branch
      %569 = sbr.rel (0) target = $region57
    $region56: #{residual_forward_pallas.4} parent=1 // pred_region
      %570 = dma.done [#allocation4], 2048
    $region57: #{residual_forward_pallas.4} parent=1 // pred_fallthru
      _
    // Predicated region
    $region58: #{residual_forward_pallas.4} parent=1 // pred_check
      _
    $region59: #{residual_forward_pallas.4} parent=1 // pred_check_branch
      %572 = sbr.rel (0) target = $region61
    $region60: #{residual_forward_pallas.4} parent=1 // pred_region
      %573 = dma.done [#allocation12], 16
    $region61: #{residual_forward_pallas.4} parent=1 // pred_fallthru
      _
    // Predicated region
    $region62: #{residual_forward_pallas.4} parent=1 // pred_check
      _
    $region63: #{residual_forward_pallas.4} parent=1 // pred_check_branch
      %575 = sbr.rel (0) target = $region65
    $region64: #{residual_forward_pallas.4} parent=1 // pred_region
      %576 = dma.done [#allocation12], 16
    $region65: #{residual_forward_pallas.4} parent=1 // pred_fallthru
      _
    %577 = vsyncpa [#allocation3], 1
    %578 = vsyncpa [#allocation6], 1
    %579 = vsyncpa [#allocation9], 1
    %580 = vsyncpa [#allocation4], 1
    %581 = vsyncpa [#allocation12], 1

// kernel: residual_forward_pallas.5
$region0: #{residual_forward_pallas.5}
  #allocation0 [shape = 'u32[]', space=smem, size = 0x4, offset = 0x4, fixed_abs, tag = 'smem constant byte address 0x4 - core index']
  #allocation1 [shape = 'u32[144,128]{1,0:T(1,128)}', space=vmem, size = 0x12000, scoped, tag = 'internal scratch']
  %s0 = inlined_call_operand.hbm [shape: f32[128,8], index: 0, kind: input, shape index: {}]
  %s1 = inlined_call_operand.hbm [shape: f32[128,4], index: 1, kind: input, shape index: {}]
  %s2 = inlined_call_operand.hbm [shape: f32[4,8], index: 2, kind: input, shape index: {}]
  %s3 = inlined_call_operand.hbm [shape: f32[1,8], index: 3, kind: input, shape index: {}]
  %s4 = inlined_call_operand.hbm [shape: f32[1,8], index: 4, kind: input, shape index: {}]
  %s5 = inlined_call_operand.hbm [shape: f32[1,8], index: 5, kind: input, shape index: {}]
  %s6 = inlined_call_operand.hbm [shape: f32[1,8], index: 6, kind: input, shape index: {}]
  %s7 = inlined_call_operand.hbm [shape: f32[1,8], index: 7, kind: input, shape index: {}]
  %s8 = inlined_call_operand.hbm [shape: f32[1,8], index: 8, kind: input, shape index: {}]
  %s9 = inlined_call_operand.hbm [shape: f32[1,8], index: 9, kind: input, shape index: {}]
  %s10 = inlined_call_operand.hbm [shape: f32[1,8], index: 10, kind: input, shape index: {}]
  %s11 = inlined_call_operand.hbm [shape: f32[128,8], index: 11, kind: output, shape index: {}]
  %s12 = sld [smem:[#allocation0]]
  $region98: #{residual_forward_pallas.5} parent=0
    _
  %s14 = ssub.s32 1, %s12
  %s15 = scalar_select 0, %s14, %s12
  $region1: #{residual_forward_pallas.5} parent=0
    #allocation2 [shape = 'u8[65536]{0}', space=vmem, size = 0x10000, scoped, tag = 'input window, operand 0, single buffered']
    #allocation3 [shape = 's32[1]{0}', space=sflag, size = 0x4, scoped, tag = 'scoped memory for residual_forward_pallas.5']
    #allocation4 [shape = 's32[1]{0}', space=sflag, size = 0x4, scoped, tag = 'scoped memory for residual_forward_pallas.5']
    #allocation5 [shape = 'u8[65536]{0}', space=vmem, size = 0x10000, scoped, tag = 'input window, operand 1, single buffered']
    #allocation6 [shape = 's32[1]{0}', space=sflag, size = 0x4, scoped, tag = 'scoped memory for residual_forward_pallas.5']
    #allocation7 [shape = 'u8[2048]{0}', space=vmem, size = 0x800, scoped, tag = 'input window, operand 2, single buffered']
    #allocation8 [shape = 'u8[512]{0}', space=vmem, size = 0x400, scoped, tag = 'input window, operand 3, single buffered']
    #allocation9 [shape = 's32[1]{0}', space=sflag, size = 0x4, scoped, tag = 'scoped memory for residual_forward_pallas.5']
    #allocation10 [shape = 'u8[512]{0}', space=vmem, size = 0x400, scoped, tag = 'input window, operand 4, single buffered']
    #allocation11 [shape = 'u8[512]{0}', space=vmem, size = 0x400, scoped, tag = 'input window, operand 5, single buffered']
    #allocation12 [shape = 's32[1]{0}', space=sflag, size = 0x4, scoped, tag = 'scoped memory for residual_forward_pallas.5']
    #allocation13 [shape = 'u8[512]{0}', space=vmem, size = 0x400, scoped, tag = 'input window, operand 6, single buffered']
    #allocation14 [shape = 'u8[512]{0}', space=vmem, size = 0x400, scoped, tag = 'input window, operand 7, single buffered']
    #allocation15 [shape = 's32[1]{0}', space=sflag, size = 0x4, scoped, tag = 'scoped memory for residual_forward_pallas.5']
    #allocation16 [shape = 'u8[512]{0}', space=vmem, size = 0x400, scoped, tag = 'input window, operand 8, single buffered']
    #allocation17 [shape = 'u8[512]{0}', space=vmem, size = 0x400, scoped, tag = 'input window, operand 9, single buffered']
    #allocation18 [shape = 's32[1]{0}', space=sflag, size = 0x4, scoped, tag = 'scoped memory for residual_forward_pallas.5']
    #allocation19 [shape = 'u8[512]{0}', space=vmem, size = 0x400, scoped, tag = 'input window, operand 10, single buffered']
    #allocation20 [shape = 'u8[65536]{0}', space=vmem, size = 0x10000, scoped, tag = 'output window, operand 0, single buffered']
    %16 = vsyncpa [#allocation3], 0
    %17 = vsyncpa [#allocation6], 0
    %18 = vsyncpa [#allocation9], 0
    %19 = vsyncpa [#allocation12], 0
    %20 = vsyncpa [#allocation15], 0
    %21 = vsyncpa [#allocation18], 0
    %22 = vsyncpa [#allocation4], 0
    // Predicated region
    $region2: #{residual_forward_pallas.5} parent=1 // pred_check
      _
    $region3: #{residual_forward_pallas.5} parent=1 // pred_check_branch
      %24 = sbr.rel (0) target = $region5
    $region4: #{residual_forward_pallas.5} parent=1 // pred_region
      %s26 = ssub.s32 2048, 2048
      %27 = vsyncadd [#allocation3], %s26
      %s28 = sshll.u32 [#allocation2], 4
      %s29 = int_to_ptr.vmem [resolvable:$true] %s28
      %34 = dma.hbm_to_vmem [thread:$0]  %s0, 2048, %s29, [#allocation3], 128, 128, 8
    $region5: #{residual_forward_pallas.5} parent=1 // pred_fallthru
      _
    // Predicated region
    $region6: #{residual_forward_pallas.5} parent=1 // pred_check
      _
    $region7: #{residual_forward_pallas.5} parent=1 // pred_check_branch
      %36 = sbr.rel (0) target = $region9
    $region8: #{residual_forward_pallas.5} parent=1 // pred_region
      %s38 = ssub.s32 2048, 2048
      %39 = vsyncadd [#allocation6], %s38
      %s40 = sshll.u32 [#allocation5], 4
      %s41 = int_to_ptr.vmem [resolvable:$true] %s40
      %46 = dma.hbm_to_vmem [thread:$0]  %s1, 2048, %s41, [#allocation6], 128, 128, 8
    $region9: #{residual_forward_pallas.5} parent=1 // pred_fallthru
      _
    // Predicated region
    $region10: #{residual_forward_pallas.5} parent=1 // pred_check
      _
    $region11: #{residual_forward_pallas.5} parent=1 // pred_check_branch
      %48 = sbr.rel (0) target = $region13
    $region12: #{residual_forward_pallas.5} parent=1 // pred_region
      %s50 = ssub.s32 64, 64
      %51 = vsyncadd [#allocation6], %s50
      %s53 = sshll.u32 [#allocation7], 4
      %s54 = int_to_ptr.vmem [resolvable:$true] %s53
      %56 = dma.hbm_to_vmem [thread:$0]  %s2, 64, %s54, [#allocation6]
    $region13: #{residual_forward_pallas.5} parent=1 // pred_fallthru
      _
    // Predicated region
    $region14: #{residual_forward_pallas.5} parent=1 // pred_check
      _
    $region15: #{residual_forward_pallas.5} parent=1 // pred_check_branch
      %58 = sbr.rel (0) target = $region17
    $region16: #{residual_forward_pallas.5} parent=1 // pred_region
      %s60 = ssub.s32 16, 16
      %61 = vsyncadd [#allocation9], %s60
      %s63 = sshll.u32 [#allocation8], 4
      %s64 = int_to_ptr.vmem [resolvable:$true] %s63
      %66 = dma.hbm_to_vmem [thread:$0]  %s3, 16, %s64, [#allocation9]
    $region17: #{residual_forward_pallas.5} parent=1 // pred_fallthru
      _
    // Predicated region
    $region18: #{residual_forward_pallas.5} parent=1 // pred_check
      _
    $region19: #{residual_forward_pallas.5} parent=1 // pred_check_branch
      %68 = sbr.rel (0) target = $region21
    $region20: #{residual_forward_pallas.5} parent=1 // pred_region
      %s70 = ssub.s32 16, 16
      %71 = vsyncadd [#allocation9], %s70
      %s73 = sshll.u32 [#allocation10], 4
      %s74 = int_to_ptr.vmem [resolvable:$true] %s73
      %76 = dma.hbm_to_vmem [thread:$0]  %s4, 16, %s74, [#allocation9]
    $region21: #{residual_forward_pallas.5} parent=1 // pred_fallthru
      _
    // Predicated region
    $region22: #{residual_forward_pallas.5} parent=1 // pred_check
      _
    $region23: #{residual_forward_pallas.5} parent=1 // pred_check_branch
      %78 = sbr.rel (0) target = $region25
    $region24: #{residual_forward_pallas.5} parent=1 // pred_region
      %s80 = ssub.s32 16, 16
      %81 = vsyncadd [#allocation12], %s80
      %s83 = sshll.u32 [#allocation11], 4
      %s84 = int_to_ptr.vmem [resolvable:$true] %s83
      %86 = dma.hbm_to_vmem [thread:$0]  %s5, 16, %s84, [#allocation12]
    $region25: #{residual_forward_pallas.5} parent=1 // pred_fallthru
      _
    // Predicated region
    $region26: #{residual_forward_pallas.5} parent=1 // pred_check
      _
    $region27: #{residual_forward_pallas.5} parent=1 // pred_check_branch
      %88 = sbr.rel (0) target = $region29
    $region28: #{residual_forward_pallas.5} parent=1 // pred_region
      %s90 = ssub.s32 16, 16
      %91 = vsyncadd [#allocation12], %s90
      %s93 = sshll.u32 [#allocation13], 4
      %s94 = int_to_ptr.vmem [resolvable:$true] %s93
      %96 = dma.hbm_to_vmem [thread:$0]  %s6, 16, %s94, [#allocation12]
    $region29: #{residual_forward_pallas.5} parent=1 // pred_fallthru
      _
    // Predicated region
    $region30: #{residual_forward_pallas.5} parent=1 // pred_check
      _
    $region31: #{residual_forward_pallas.5} parent=1 // pred_check_branch
      %98 = sbr.rel (0) target = $region33
    $region32: #{residual_forward_pallas.5} parent=1 // pred_region
      %s100 = ssub.s32 16, 16
      %101 = vsyncadd [#allocation15], %s100
      %s103 = sshll.u32 [#allocation14], 4
      %s104 = int_to_ptr.vmem [resolvable:$true] %s103
      %106 = dma.hbm_to_vmem [thread:$0]  %s7, 16, %s104, [#allocation15]
    $region33: #{residual_forward_pallas.5} parent=1 // pred_fallthru
      _
    // Predicated region
    $region34: #{residual_forward_pallas.5} parent=1 // pred_check
      _
    $region35: #{residual_forward_pallas.5} parent=1 // pred_check_branch
      %108 = sbr.rel (0) target = $region37
    $region36: #{residual_forward_pallas.5} parent=1 // pred_region
      %s110 = ssub.s32 16, 16
      %111 = vsyncadd [#allocation15], %s110
      %s113 = sshll.u32 [#allocation16], 4
      %s114 = int_to_ptr.vmem [resolvable:$true] %s113
      %116 = dma.hbm_to_vmem [thread:$0]  %s8, 16, %s114, [#allocation15]
    $region37: #{residual_forward_pallas.5} parent=1 // pred_fallthru
      _
    // Predicated region
    $region38: #{residual_forward_pallas.5} parent=1 // pred_check
      _
    $region39: #{residual_forward_pallas.5} parent=1 // pred_check_branch
      %118 = sbr.rel (0) target = $region41
    $region40: #{residual_forward_pallas.5} parent=1 // pred_region
      %s120 = ssub.s32 16, 16
      %121 = vsyncadd [#allocation18], %s120
      %s123 = sshll.u32 [#allocation17], 4
      %s124 = int_to_ptr.vmem [resolvable:$true] %s123
      %126 = dma.hbm_to_vmem [thread:$0]  %s9, 16, %s124, [#allocation18]
    $region41: #{residual_forward_pallas.5} parent=1 // pred_fallthru
      _
    // Predicated region
    $region42: #{residual_forward_pallas.5} parent=1 // pred_check
      _
    $region43: #{residual_forward_pallas.5} parent=1 // pred_check_branch
      %128 = sbr.rel (0) target = $region45
    $region44: #{residual_forward_pallas.5} parent=1 // pred_region
      %s130 = ssub.s32 16, 16
      %131 = vsyncadd [#allocation18], %s130
      %s133 = sshll.u32 [#allocation19], 4
      %s134 = int_to_ptr.vmem [resolvable:$true] %s133
      %136 = dma.hbm_to_vmem [thread:$0]  %s10, 16, %s134, [#allocation18]
    $region45: #{residual_forward_pallas.5} parent=1 // pred_fallthru
      _
    // Predicated region
    $region46: #{residual_forward_pallas.5} parent=1 // pred_check
      _
    $region47: #{residual_forward_pallas.5} parent=1 // pred_check_branch
      %138 = sbr.rel (0) target = $region49
    $region48: #{residual_forward_pallas.5} parent=1 // pred_region
      %139 = dma.done [#allocation3], 2048
    $region49: #{residual_forward_pallas.5} parent=1 // pred_fallthru
      _
    // Predicated region
    $region50: #{residual_forward_pallas.5} parent=1 // pred_check
      _
    $region51: #{residual_forward_pallas.5} parent=1 // pred_check_branch
      %141 = sbr.rel (0) target = $region53
    $region52: #{residual_forward_pallas.5} parent=1 // pred_region
      %142 = dma.done [#allocation6], 2048
    $region53: #{residual_forward_pallas.5} parent=1 // pred_fallthru
      _
    // Predicated region
    $region54: #{residual_forward_pallas.5} parent=1 // pred_check
      _
    $region55: #{residual_forward_pallas.5} parent=1 // pred_check_branch
      %144 = sbr.rel (0) target = $region57
    $region56: #{residual_forward_pallas.5} parent=1 // pred_region
      %145 = dma.done [#allocation6], 64
    $region57: #{residual_forward_pallas.5} parent=1 // pred_fallthru
      _
    // Predicated region
    $region58: #{residual_forward_pallas.5} parent=1 // pred_check
      _
    $region59: #{residual_forward_pallas.5} parent=1 // pred_check_branch
      %147 = sbr.rel (0) target = $region61
    $region60: #{residual_forward_pallas.5} parent=1 // pred_region
      %148 = dma.done [#allocation9], 16
    $region61: #{residual_forward_pallas.5} parent=1 // pred_fallthru
      _
    // Predicated region
    $region62: #{residual_forward_pallas.5} parent=1 // pred_check
      _
    $region63: #{residual_forward_pallas.5} parent=1 // pred_check_branch
      %150 = sbr.rel (0) target = $region65
    $region64: #{residual_forward_pallas.5} parent=1 // pred_region
      %151 = dma.done [#allocation9], 16
    $region65: #{residual_forward_pallas.5} parent=1 // pred_fallthru
      _
    // Predicated region
    $region66: #{residual_forward_pallas.5} parent=1 // pred_check
      _
    $region67: #{residual_forward_pallas.5} parent=1 // pred_check_branch
      %153 = sbr.rel (0) target = $region69
    $region68: #{residual_forward_pallas.5} parent=1 // pred_region
      %154 = dma.done [#allocation12], 16
    $region69: #{residual_forward_pallas.5} parent=1 // pred_fallthru
      _
    // Predicated region
    $region70: #{residual_forward_pallas.5} parent=1 // pred_check
      _
    $region71: #{residual_forward_pallas.5} parent=1 // pred_check_branch
      %156 = sbr.rel (0) target = $region73
    $region72: #{residual_forward_pallas.5} parent=1 // pred_region
      %157 = dma.done [#allocation12], 16
    $region73: #{residual_forward_pallas.5} parent=1 // pred_fallthru
      _
    // Predicated region
    $region74: #{residual_forward_pallas.5} parent=1 // pred_check
      _
    $region75: #{residual_forward_pallas.5} parent=1 // pred_check_branch
      %159 = sbr.rel (0) target = $region77
    $region76: #{residual_forward_pallas.5} parent=1 // pred_region
      %160 = dma.done [#allocation15], 16
    $region77: #{residual_forward_pallas.5} parent=1 // pred_fallthru
      _
    // Predicated region
    $region78: #{residual_forward_pallas.5} parent=1 // pred_check
      _
    $region79: #{residual_forward_pallas.5} parent=1 // pred_check_branch
      %162 = sbr.rel (0) target = $region81
    $region80: #{residual_forward_pallas.5} parent=1 // pred_region
      %163 = dma.done [#allocation15], 16
    $region81: #{residual_forward_pallas.5} parent=1 // pred_fallthru
      _
    // Predicated region
    $region82: #{residual_forward_pallas.5} parent=1 // pred_check
      _
    $region83: #{residual_forward_pallas.5} parent=1 // pred_check_branch
      %165 = sbr.rel (0) target = $region85
    $region84: #{residual_forward_pallas.5} parent=1 // pred_region
      %166 = dma.done [#allocation18], 16
    $region85: #{residual_forward_pallas.5} parent=1 // pred_fallthru
      _
    // Predicated region
    $region86: #{residual_forward_pallas.5} parent=1 // pred_check
      _
    $region87: #{residual_forward_pallas.5} parent=1 // pred_check_branch
      %168 = sbr.rel (0) target = $region89
    $region88: #{residual_forward_pallas.5} parent=1 // pred_region
      %169 = dma.done [#allocation18], 16
    $region89: #{residual_forward_pallas.5} parent=1 // pred_fallthru
      _
    %v170 = vld [vmem:[#allocation8] sm:$0x1]
    %v171 = vld [vmem:[#allocation10] sm:$0x1]
    %v172 = vld [vmem:[#allocation11] sm:$0x1]
    %v173 = vld [vmem:[#allocation13] sm:$0x1]
    %v174 = vmul.f32 %v170, 0.0078125
    %v175 = vmul.f32 %v171, 0.0078125
    %v176 = vmul.f32 %v174, %v174
    %v177 = vsub.f32 %v175, %v176
    %v178 = vmax.f32 %v177, 0.0
    %v179 = vadd.f32 %v178, 1e-05
    %v180 = vrsqrt.pop %v179
    %v181 = vmul.f32 %v172, %v180
    %v182 = vmul.f32 %v174, %v181
    %v183 = vsub.f32 %v173, %v182
    %v184 = vld [vmem:[#allocation14] sm:$0x1]
    %v185 = vld [vmem:[#allocation16] sm:$0x1]
    %v186 = vld [vmem:[#allocation17] sm:$0x1]
    %v187 = vld [vmem:[#allocation19] sm:$0x1]
    %v188 = vmul.f32 %v184, 0.0078125
    %v189 = vmul.f32 %v185, 0.0078125
    %v190 = vmul.f32 %v188, %v188
    %v191 = vsub.f32 %v189, %v190
    %v192 = vmax.f32 %v191, 0.0
    %v193 = vadd.f32 %v192, 1e-05
    %v194 = vrsqrt.pop %v193
    %v195 = vmul.f32 %v186, %v194
    %v196 = vmul.f32 %v188, %v195
    %v197 = vsub.f32 %v187, %v196
    %v198 = vld [vmem:[#allocation5] sm:$0xff]
    %v199 = vld [vmem:[#allocation5 + $0x8] sm:$0xff]
    %v200 = vld [vmem:[#allocation5 + $0x10] sm:$0xff]
    %v201 = vld [vmem:[#allocation5 + $0x18] sm:$0xff]
    %v202 = vld [vmem:[#allocation5 + $0x20] sm:$0xff]
    %v203 = vld [vmem:[#allocation5 + $0x28] sm:$0xff]
    %v204 = vld [vmem:[#allocation5 + $0x30] sm:$0xff]
    %v205 = vld [vmem:[#allocation5 + $0x38] sm:$0xff]
    %v206 = vld [vmem:[#allocation5 + $0x40] sm:$0xff]
    %v207 = vld [vmem:[#allocation5 + $0x48] sm:$0xff]
    %v208 = vld [vmem:[#allocation5 + $0x50] sm:$0xff]
    %v209 = vld [vmem:[#allocation5 + $0x58] sm:$0xff]
    %v210 = vld [vmem:[#allocation5 + $0x60] sm:$0xff]
    %v211 = vld [vmem:[#allocation5 + $0x68] sm:$0xff]
    %v212 = vld [vmem:[#allocation5 + $0x70] sm:$0xff]
    %v213 = vld [vmem:[#allocation5 + $0x78] sm:$0xff]
    %v214 = vld [vmem:[#allocation7] sm:$0xf]
    %vm215 = vcmask 31744
    %v217 = vsel %vm215, %v198, 0
    %v220 = vsel %vm215, %v199, 0
    %v223 = vsel %vm215, %v200, 0
    %v226 = vsel %vm215, %v201, 0
    %v229 = vsel %vm215, %v202, 0
    %v232 = vsel %vm215, %v203, 0
    %v235 = vsel %vm215, %v204, 0
    %v238 = vsel %vm215, %v205, 0
    %v241 = vsel %vm215, %v206, 0
    %v244 = vsel %vm215, %v207, 0
    %v247 = vsel %vm215, %v208, 0
    %v250 = vsel %vm215, %v209, 0
    %v253 = vsel %vm215, %v210, 0
    %v256 = vsel %vm215, %v211, 0
    %v259 = vsel %vm215, %v212, 0
    %v262 = vsel %vm215, %v213, 0
    %vm264 = vcmask 1043456
    %v266 = vsel %vm264, %v214, 0
    %268 = vmatprep.subr.mxu0 0.0
    %269 = vmatpush1.msra.mxu0 %v266
    %270 = vmatprep.subr.mxu0 0.0
    %271 = vmatpush1.msra.mxu0 0.0
    %272 = vmatprep.subr.mxu0 0.0
    %273 = vmatpush1.msra.mxu0 0.0
    %274 = vmatprep.subr.mxu0 0.0
    %275 = vmatpush1.msra.mxu0 0.0
    %276 = vmatprep.subr.mxu0 0.0
    %277 = vmatpush1.msra.mxu0 0.0
    %278 = vmatprep.subr.mxu0 0.0
    %279 = vmatpush1.msra.mxu0 0.0
    %280 = vmatprep.subr.mxu0 0.0
    %281 = vmatpush1.msra.mxu0 0.0
    %282 = vmatprep.subr.mxu0 0.0
    %283 = vmatpush1.msra.mxu0 0.0
    %284 = vmatprep.subr.mxu0 0.0
    %285 = vmatpush1.msra.mxu0 0.0
    %286 = vmatprep.subr.mxu0 0.0
    %287 = vmatpush1.msra.mxu0 0.0
    %288 = vmatprep.subr.mxu0 0.0
    %289 = vmatpush1.msra.mxu0 0.0
    %290 = vmatprep.subr.mxu0 0.0
    %291 = vmatpush1.msra.mxu0 0.0
    %292 = vmatprep.subr.mxu0 0.0
    %293 = vmatpush1.msra.mxu0 0.0
    %294 = vmatprep.subr.mxu0 0.0
    %295 = vmatpush1.msra.mxu0 0.0
    %296 = vmatprep.subr.mxu0 0.0
    %297 = vmatpush1.msra.mxu0 0.0
    %298 = vmatprep.subr.mxu0 0.0
    %299 = vmatpush1.msra.mxu0 0.0
    %300 = vmatprep.subr.mxu0 0.0
    %301 = vmatpush1.msra.mxu0 0.0
    %302 = vmatprep.subr.mxu0 0.0
    %303 = vmatpush1.msra.mxu0 0.0
    %304 = vmatprep.subr.mxu0 0.0
    %305 = vmatpush1.msra.mxu0 0.0
    %306 = vmatprep.subr.mxu0 0.0
    %307 = vmatpush1.msra.mxu0 0.0
    %308 = vmatprep.subr.mxu0 0.0
    %309 = vmatpush1.msra.mxu0 0.0
    %310 = vmatprep.subr.mxu0 0.0
    %311 = vmatpush1.msra.mxu0 0.0
    %312 = vmatprep.subr.mxu0 0.0
    %313 = vmatpush1.msra.mxu0 0.0
    %314 = vmatprep.subr.mxu0 0.0
    %315 = vmatpush1.msra.mxu0 0.0
    %316 = vmatprep.subr.mxu0 0.0
    %317 = vmatpush1.msra.mxu0 0.0
    %318 = vmatprep.subr.mxu0 0.0
    %319 = vmatpush1.msra.mxu0 0.0
    %320 = vmatprep.subr.mxu0 0.0
    %321 = vmatpush1.msra.mxu0 0.0
    %322 = vmatprep.subr.mxu0 0.0
    %323 = vmatpush1.msra.mxu0 0.0
    %324 = vmatprep.subr.mxu0 0.0
    %325 = vmatpush1.msra.mxu0 0.0
    %326 = vmatprep.subr.mxu0 0.0
    %327 = vmatpush1.msra.mxu0 0.0
    %328 = vmatprep.subr.mxu0 0.0
    %329 = vmatpush1.msra.mxu0 0.0
    %330 = vmatprep.subr.mxu0 0.0
    %331 = vmatpush1.msra.mxu0 0.0
    %332 = vmatprep.mubr.f32.mxu0 0.0
    %333 = vmatmul.mubr.f32.gmra.mrb[0].mxu0 %v217
    %v334 = vpop.f32.mrb[0].mxu0
    %v335 = vadd.f32 0.0, %v334
    %v336 = vpop.f32.mrb[0].mxu0
    %337 = vmatprep.mubr.f32.mxu0 0.0
    %338 = vmatmul.mubr.f32.gmra.mrb[0].mxu0 %v220
    %v339 = vpop.f32.mrb[0].mxu0
    %v340 = vadd.f32 0.0, %v339
    %v341 = vpop.f32.mrb[0].mxu0
    %342 = vmatprep.mubr.f32.mxu0 0.0
    %343 = vmatmul.mubr.f32.gmra.mrb[0].mxu0 %v223
    %v344 = vpop.f32.mrb[0].mxu0
    %v345 = vadd.f32 0.0, %v344
    %v346 = vpop.f32.mrb[0].mxu0
    %347 = vmatprep.mubr.f32.mxu0 0.0
    %348 = vmatmul.mubr.f32.gmra.mrb[0].mxu0 %v226
    %v349 = vpop.f32.mrb[0].mxu0
    %v350 = vadd.f32 0.0, %v349
    %v351 = vpop.f32.mrb[0].mxu0
    %352 = vmatprep.mubr.f32.mxu0 0.0
    %353 = vmatmul.mubr.f32.gmra.mrb[0].mxu0 %v229
    %v354 = vpop.f32.mrb[0].mxu0
    %v355 = vadd.f32 0.0, %v354
    %v356 = vpop.f32.mrb[0].mxu0
    %357 = vmatprep.mubr.f32.mxu0 0.0
    %358 = vmatmul.mubr.f32.gmra.mrb[0].mxu0 %v232
    %v359 = vpop.f32.mrb[0].mxu0
    %v360 = vadd.f32 0.0, %v359
    %v361 = vpop.f32.mrb[0].mxu0
    %362 = vmatprep.mubr.f32.mxu0 0.0
    %363 = vmatmul.mubr.f32.gmra.mrb[0].mxu0 %v235
    %v364 = vpop.f32.mrb[0].mxu0
    %v365 = vadd.f32 0.0, %v364
    %v366 = vpop.f32.mrb[0].mxu0
    %367 = vmatprep.mubr.f32.mxu0 0.0
    %368 = vmatmul.mubr.f32.gmra.mrb[0].mxu0 %v238
    %v369 = vpop.f32.mrb[0].mxu0
    %v370 = vadd.f32 0.0, %v369
    %v371 = vpop.f32.mrb[0].mxu0
    %372 = vmatprep.mubr.f32.mxu0 0.0
    %373 = vmatmul.mubr.f32.gmra.mrb[0].mxu0 %v241
    %v374 = vpop.f32.mrb[0].mxu0
    %v375 = vadd.f32 0.0, %v374
    %v376 = vpop.f32.mrb[0].mxu0
    %377 = vmatprep.mubr.f32.mxu0 0.0
    %378 = vmatmul.mubr.f32.gmra.mrb[0].mxu0 %v244
    %v379 = vpop.f32.mrb[0].mxu0
    %v380 = vadd.f32 0.0, %v379
    %v381 = vpop.f32.mrb[0].mxu0
    %382 = vmatprep.mubr.f32.mxu0 0.0
    %383 = vmatmul.mubr.f32.gmra.mrb[0].mxu0 %v247
    %v384 = vpop.f32.mrb[0].mxu0
    %v385 = vadd.f32 0.0, %v384
    %v386 = vpop.f32.mrb[0].mxu0
    %387 = vmatprep.mubr.f32.mxu0 0.0
    %388 = vmatmul.mubr.f32.gmra.mrb[0].mxu0 %v250
    %v389 = vpop.f32.mrb[0].mxu0
    %v390 = vadd.f32 0.0, %v389
    %v391 = vpop.f32.mrb[0].mxu0
    %392 = vmatprep.mubr.f32.mxu0 0.0
    %393 = vmatmul.mubr.f32.gmra.mrb[0].mxu0 %v253
    %v394 = vpop.f32.mrb[0].mxu0
    %v395 = vadd.f32 0.0, %v394
    %v396 = vpop.f32.mrb[0].mxu0
    %397 = vmatprep.mubr.f32.mxu0 0.0
    %398 = vmatmul.mubr.f32.gmra.mrb[0].mxu0 %v256
    %v399 = vpop.f32.mrb[0].mxu0
    %v400 = vadd.f32 0.0, %v399
    %v401 = vpop.f32.mrb[0].mxu0
    %402 = vmatprep.mubr.f32.mxu0 0.0
    %403 = vmatmul.mubr.f32.gmra.mrb[0].mxu0 %v259
    %v404 = vpop.f32.mrb[0].mxu0
    %v405 = vadd.f32 0.0, %v404
    %v406 = vpop.f32.mrb[0].mxu0
    %407 = vmatprep.mubr.f32.mxu0 0.0
    %408 = vmatmul.mubr.f32.gmra.mrb[0].mxu0 %v262
    %v409 = vpop.f32.mrb[0].mxu0
    %v410 = vadd.f32 0.0, %v409
    %v411 = vpop.f32.mrb[0].mxu0
    %412 = vdwg.mxu0
    %v413 = vld [vmem:[#allocation2] sm:$0xff]
    %v414 = vld [vmem:[#allocation2 + $0x8] sm:$0xff]
    %v415 = vld [vmem:[#allocation2 + $0x10] sm:$0xff]
    %v416 = vld [vmem:[#allocation2 + $0x18] sm:$0xff]
    %v417 = vld [vmem:[#allocation2 + $0x20] sm:$0xff]
    %v418 = vld [vmem:[#allocation2 + $0x28] sm:$0xff]
    %v419 = vld [vmem:[#allocation2 + $0x30] sm:$0xff]
    %v420 = vld [vmem:[#allocation2 + $0x38] sm:$0xff]
    %v421 = vld [vmem:[#allocation2 + $0x40] sm:$0xff]
    %v422 = vld [vmem:[#allocation2 + $0x48] sm:$0xff]
    %v423 = vld [vmem:[#allocation2 + $0x50] sm:$0xff]
    %v424 = vld [vmem:[#allocation2 + $0x58] sm:$0xff]
    %v425 = vld [vmem:[#allocation2 + $0x60] sm:$0xff]
    %v426 = vld [vmem:[#allocation2 + $0x68] sm:$0xff]
    %v427 = vld [vmem:[#allocation2 + $0x70] sm:$0xff]
    %v428 = vld [vmem:[#allocation2 + $0x78] sm:$0xff]
    %v430 = vlaneseq
    %v431 = vshrl.u32 %v430, 7
    %v432 = vsub.s32 0, %v431
    %v433 = vrot.slane %v181, %v432
    %v435 = vmul.f32 %v413, %v433
    %v436 = vmul.f32 %v414, %v433
    %v437 = vmul.f32 %v415, %v433
    %v438 = vmul.f32 %v416, %v433
    %v439 = vmul.f32 %v417, %v433
    %v440 = vmul.f32 %v418, %v433
    %v441 = vmul.f32 %v419, %v433
    %v442 = vmul.f32 %v420, %v433
    %v443 = vmul.f32 %v421, %v433
    %v444 = vmul.f32 %v422, %v433
    %v445 = vmul.f32 %v423, %v433
    %v446 = vmul.f32 %v424, %v433
    %v447 = vmul.f32 %v425, %v433
    %v448 = vmul.f32 %v426, %v433
    %v449 = vmul.f32 %v427, %v433
    %v450 = vmul.f32 %v428, %v433
    %v452 = vlaneseq
    %v453 = vshrl.u32 %v452, 7
    %v454 = vsub.s32 0, %v453
    %v455 = vrot.slane %v195, %v454
    %v457 = vmul.f32 %v335, %v455
    %v458 = vmul.f32 %v340, %v455
    %v459 = vmul.f32 %v345, %v455
    %v460 = vmul.f32 %v350, %v455
    %v461 = vmul.f32 %v355, %v455
    %v462 = vmul.f32 %v360, %v455
    %v463 = vmul.f32 %v365, %v455
    %v464 = vmul.f32 %v370, %v455
    %v465 = vmul.f32 %v375, %v455
    %v466 = vmul.f32 %v380, %v455
    %v467 = vmul.f32 %v385, %v455
    %v468 = vmul.f32 %v390, %v455
    %v469 = vmul.f32 %v395, %v455
    %v470 = vmul.f32 %v400, %v455
    %v471 = vmul.f32 %v405, %v455
    %v472 = vmul.f32 %v410, %v455
    %v473 = vadd.f32 %v435, %v457
    %v474 = vadd.f32 %v436, %v458
    %v475 = vadd.f32 %v437, %v459
    %v476 = vadd.f32 %v438, %v460
    %v477 = vadd.f32 %v439, %v461
    %v478 = vadd.f32 %v440, %v462
    %v479 = vadd.f32 %v441, %v463
    %v480 = vadd.f32 %v442, %v464
    %v481 = vadd.f32 %v443, %v465
    %v482 = vadd.f32 %v444, %v466
    %v483 = vadd.f32 %v445, %v467
    %v484 = vadd.f32 %v446, %v468
    %v485 = vadd.f32 %v447, %v469
    %v486 = vadd.f32 %v448, %v470
    %v487 = vadd.f32 %v449, %v471
    %v488 = vadd.f32 %v450, %v472
    %v489 = vadd.f32 %v183, %v197
    %v491 = vlaneseq
    %v492 = vshrl.u32 %v491, 7
    %v493 = vsub.s32 0, %v492
    %v494 = vrot.slane %v489, %v493
    %v496 = vadd.f32 %v473, %v494
    %v497 = vadd.f32 %v474, %v494
    %v498 = vadd.f32 %v475, %v494
    %v499 = vadd.f32 %v476, %v494
    %v500 = vadd.f32 %v477, %v494
    %v501 = vadd.f32 %v478, %v494
    %v502 = vadd.f32 %v479, %v494
    %v503 = vadd.f32 %v480, %v494
    %v504 = vadd.f32 %v481, %v494
    %v505 = vadd.f32 %v482, %v494
    %v506 = vadd.f32 %v483, %v494
    %v507 = vadd.f32 %v484, %v494
    %v508 = vadd.f32 %v485, %v494
    %v509 = vadd.f32 %v486, %v494
    %v510 = vadd.f32 %v487, %v494
    %v511 = vadd.f32 %v488, %v494
    %v512 = vmax.f32 %v496, 0.0
    %v513 = vmax.f32 %v497, 0.0
    %v514 = vmax.f32 %v498, 0.0
    %v515 = vmax.f32 %v499, 0.0
    %v516 = vmax.f32 %v500, 0.0
    %v517 = vmax.f32 %v501, 0.0
    %v518 = vmax.f32 %v502, 0.0
    %v519 = vmax.f32 %v503, 0.0
    %v520 = vmax.f32 %v504, 0.0
    %v521 = vmax.f32 %v505, 0.0
    %v522 = vmax.f32 %v506, 0.0
    %v523 = vmax.f32 %v507, 0.0
    %v524 = vmax.f32 %v508, 0.0
    %v525 = vmax.f32 %v509, 0.0
    %v526 = vmax.f32 %v510, 0.0
    %v527 = vmax.f32 %v511, 0.0
    %vm528 = vcmask 64512
    %529 = vst.msk [vmem:[#allocation20] sm:$0xff] %vm528, %v512
    %530 = vst.msk [vmem:[#allocation20 + $0x8] sm:$0xff] %vm528, %v513
    %531 = vst.msk [vmem:[#allocation20 + $0x10] sm:$0xff] %vm528, %v514
    %532 = vst.msk [vmem:[#allocation20 + $0x18] sm:$0xff] %vm528, %v515
    %533 = vst.msk [vmem:[#allocation20 + $0x20] sm:$0xff] %vm528, %v516
    %534 = vst.msk [vmem:[#allocation20 + $0x28] sm:$0xff] %vm528, %v517
    %535 = vst.msk [vmem:[#allocation20 + $0x30] sm:$0xff] %vm528, %v518
    %536 = vst.msk [vmem:[#allocation20 + $0x38] sm:$0xff] %vm528, %v519
    %537 = vst.msk [vmem:[#allocation20 + $0x40] sm:$0xff] %vm528, %v520
    %538 = vst.msk [vmem:[#allocation20 + $0x48] sm:$0xff] %vm528, %v521
    %539 = vst.msk [vmem:[#allocation20 + $0x50] sm:$0xff] %vm528, %v522
    %540 = vst.msk [vmem:[#allocation20 + $0x58] sm:$0xff] %vm528, %v523
    %541 = vst.msk [vmem:[#allocation20 + $0x60] sm:$0xff] %vm528, %v524
    %542 = vst.msk [vmem:[#allocation20 + $0x68] sm:$0xff] %vm528, %v525
    %543 = vst.msk [vmem:[#allocation20 + $0x70] sm:$0xff] %vm528, %v526
    %544 = vst.msk [vmem:[#allocation20 + $0x78] sm:$0xff] %vm528, %v527
    // Predicated region
    $region90: #{residual_forward_pallas.5} parent=1 // pred_check
      _
    $region91: #{residual_forward_pallas.5} parent=1 // pred_check_branch
      %546 = sbr.rel (0) target = $region93
    $region92: #{residual_forward_pallas.5} parent=1 // pred_region
      %s548 = ssub.s32 2048, 2048
      %549 = vsyncadd [#allocation4], %s548
      %s550 = sshll.u32 [#allocation20], 4
      %s551 = int_to_ptr.vmem [resolvable:$true] %s550
      %556 = dma.vmem_to_hbm [thread:$0]  %s551, 2048, %s11, [#allocation4], 128, 128, 8
    $region93: #{residual_forward_pallas.5} parent=1 // pred_fallthru
      _
    // Predicated region
    $region94: #{residual_forward_pallas.5} parent=1 // pred_check
      _
    $region95: #{residual_forward_pallas.5} parent=1 // pred_check_branch
      %558 = sbr.rel (0) target = $region97
    $region96: #{residual_forward_pallas.5} parent=1 // pred_region
      %559 = dma.done [#allocation4], 2048
    $region97: #{residual_forward_pallas.5} parent=1 // pred_fallthru
      _
    %560 = vsyncpa [#allocation3], 1
    %561 = vsyncpa [#allocation6], 1
    %562 = vsyncpa [#allocation9], 1
    %563 = vsyncpa [#allocation12], 1
    %564 = vsyncpa [#allocation15], 1
    %565 = vsyncpa [#allocation18], 1
    %566 = vsyncpa [#allocation4], 1

</llo_original>
